<compile_context>
chip_gen: v6e
topology: v6e:2x2x1
jax: 0.10.0
libtpu: 0.0.40
codegen_flags: <defaults>
</compile_context>

<pallas_src>
import functools
import math

import jax
import jax.numpy as jnp
from jax import lax
from jax.experimental import pallas as pl
from jax.experimental.pallas import tpu as pltpu


# --------------------------- fused LSTM + FC kernel ---------------------------

def _lstm_fc_kernel(x_ref, w_ih_ref, w_hh_ref, b_ref, fc_w_ref, fc_b_ref,
                    out_ref, seq_ref, xg_ref, *,
                    layer_num, hidden_dim, batch, seq_len):
    """One grid step == one LSTM layer. Carried state lives in seq_ref scratch."""
    g = pl.program_id(0)
    H = hidden_dim
    B = batch
    T = seq_len
    IN_PAD = seq_ref.shape[-1]
    pad_cols = IN_PAD - H

    # Layer 0: the carried activation scratch starts as the (time-major,
    # zero-padded, flattened) input sequence.
    @pl.when(g == 0)
    def _():
        seq_ref[...] = x_ref[...]

    w_ih = w_ih_ref[0]          # (IN_PAD, 4H)  -- only current layer resident
    w_hh = w_hh_ref[0]          # (H, 4H)
    bias = b_ref[0]             # (1, 4H)

    # Hoisted input projection + bias for ALL timesteps of this layer: one big
    # MXU matmul off the serialized recurrence path.
    # TODO(synk): chunk over T at production B,T,H to bound xg residency.
    xg_ref[...] = (
        jnp.dot(seq_ref[...].astype(w_ih.dtype), w_ih,
                preferred_element_type=jnp.float32)
        + bias.astype(jnp.float32)
    )

    def step(t, carry):
        h, c = carry
        row = pl.multiple_of(t * B, B)
        gates = xg_ref[pl.ds(row, B), :] + jnp.dot(
            h.astype(w_hh.dtype), w_hh, preferred_element_type=jnp.float32)
        # TODO(synk): at production sizes make H a multiple of 128 so each gate
        # slice is a whole lane-aligned vreg, not a masked sub-lane select.
        i_g = jax.nn.sigmoid(gates[:, 0 * H:1 * H])
        f_g = jax.nn.sigmoid(gates[:, 1 * H:2 * H])
        g_g = jnp.tanh(gates[:, 2 * H:3 * H])
        o_g = jax.nn.sigmoid(gates[:, 3 * H:4 * H])
        c_n = f_g * c + i_g * g_g
        h_n = o_g * jnp.tanh(c_n)
        # Write this layer's h back into the carried scratch (its old content was
        # already fully consumed by the hoisted projection above); the next grid
        # iteration (next layer) reads it as its input sequence.
        h_store = h_n if pad_cols == 0 else jnp.pad(h_n, ((0, 0), (0, pad_cols)))
        seq_ref[pl.ds(row, B), :] = h_store.astype(seq_ref.dtype)
        return h_n, c_n

    h0 = jnp.zeros((B, H), jnp.float32)
    c0 = jnp.zeros((B, H), jnp.float32)
    h_last, _ = lax.fori_loop(0, T, step, (h0, c0), unroll=min(T, 8))

    # FC head on the last layer's final hidden state.
    @pl.when(g == layer_num - 1)
    def _():
        out_ref[...] = (
            jnp.dot(h_last.astype(fc_w_ref.dtype), fc_w_ref[...],
                    preferred_element_type=jnp.float32)
            + fc_b_ref[...].astype(jnp.float32)
        ).astype(out_ref.dtype)


def _padded_bytes(shape, dtype):
    """Rough (8,128)-tile-padded VMEM footprint of one array."""
    s = list(shape)
    s[-1] = -(-s[-1] // 128) * 128
    if len(s) >= 2:
        s[-2] = -(-s[-2] // 8) * 8
    return math.prod(s) * jnp.dtype(dtype).itemsize


def lstm_forward_impl(params, x_btd):
    """x (B, T, D) float32 -> (B, output_dim) float32, one pallas_call."""
    B, T, D = x_btd.shape
    layers = params["layers"]
    L = len(layers)
    H = layers[0]["w_hh_t"].shape[0]
    O = params["fc_w_t"].shape[1]
    IN_PAD = max(D, H)

    # Pack per-layer weights into stacked, zero-padded arrays so the layer grid
    # axis streams exactly one layer's weights at a time.
    def pad_rows(w):
        return jnp.pad(w, ((0, IN_PAD - w.shape[0]), (0, 0)))

    w_ih_all = jnp.stack([pad_rows(lp["w_ih_t"]) for lp in layers])   # (L, IN_PAD, 4H)
    w_hh_all = jnp.stack([lp["w_hh_t"] for lp in layers])             # (L, H, 4H)
    bias_all = jnp.stack([lp["bias"] for lp in layers])               # (L, 1, 4H)

    # Time-major, zero-padded, flattened input: (T*B, IN_PAD). Row t*B + b.
    x_flat = jnp.pad(jnp.transpose(x_btd, (1, 0, 2)),
                     ((0, 0), (0, 0), (0, IN_PAD - D))).reshape(T * B, IN_PAD)

    kernel = functools.partial(_lstm_fc_kernel, layer_num=L, hidden_dim=H,
                               batch=B, seq_len=T)

    # Explicit scoped-VMEM limit: residency (double-buffered pipelined blocks +
    # scratch) with headroom, clamped to a safe range across TPU generations.
    resident = (
        2 * _padded_bytes((T * B, IN_PAD), jnp.float32)
        + 2 * _padded_bytes((IN_PAD, 4 * H), w_ih_all.dtype)
        + 2 * _padded_bytes((H, 4 * H), w_hh_all.dtype)
        + 2 * _padded_bytes((1, 4 * H), bias_all.dtype)
        + 2 * _padded_bytes((H, O), params["fc_w_t"].dtype)
        + 2 * _padded_bytes((1, O), params["fc_b"].dtype)
        + 2 * _padded_bytes((B, O), jnp.float32)
        + _padded_bytes((T * B, IN_PAD), jnp.float32)   # seq scratch
        + _padded_bytes((T * B, 4 * H), jnp.float32)    # xg scratch
    )
    vmem_limit = int(min(64 << 20, max(16 << 20, 2 * resident)))

    grid_spec = pltpu.PrefetchScalarGridSpec(
        num_scalar_prefetch=0,
        grid=(L,),
        in_specs=[
            pl.BlockSpec((T * B, IN_PAD), lambda g: (0, 0)),        # x (resident)
            pl.BlockSpec((1, IN_PAD, 4 * H), lambda g: (g, 0, 0)),  # w_ih, per layer
            pl.BlockSpec((1, H, 4 * H), lambda g: (g, 0, 0)),       # w_hh, per layer
            pl.BlockSpec((1, 1, 4 * H), lambda g: (g, 0, 0)),       # bias, per layer
            pl.BlockSpec((H, O), lambda g: (0, 0)),                 # fc_w (resident)
            pl.BlockSpec((1, O), lambda g: (0, 0)),                 # fc_b (resident)
        ],
        out_specs=pl.BlockSpec((B, O), lambda g: (0, 0)),
        scratch_shapes=[
            pltpu.VMEM((T * B, IN_PAD), jnp.float32),   # carried layer activations
            pltpu.VMEM((T * B, 4 * H), jnp.float32),    # hoisted gate projections
        ],
    )

    return pl.pallas_call(
        kernel,
        out_shape=jax.ShapeDtypeStruct((B, O), jnp.float32),
        grid_spec=grid_spec,
        compiler_params=pltpu.CompilerParams(
            dimension_semantics=("arbitrary",),     # layer axis carries state
            vmem_limit_bytes=vmem_limit,
        ),
    )(x_flat, w_ih_all, w_hh_all, bias_all, params["fc_w_t"], params["fc_b"])


# ------------------------------- Model wrapper --------------------------------

def init_lstm_params(key, input_dim, hidden_dim, output_dim, layer_num,
                     weight_dtype=jnp.float32):
    """Deterministic init matching PyTorch nn.LSTM / nn.Linear parameter shapes.

    weight_dtype=jnp.bfloat16 recommended for production H (accumulation stays
    f32 in the kernel); f32 here so the 1e-5 reference check holds.
    """
    params = {"layers": []}
    k = 1.0 / jnp.sqrt(hidden_dim)
    for layer in range(layer_num):
        in_dim = input_dim if layer == 0 else hidden_dim
        key, k1, k2, k3, k4 = jax.random.split(key, 5)
        w_ih = jax.random.uniform(k1, (4 * hidden_dim, in_dim), jnp.float32, -k, k)
        w_hh = jax.random.uniform(k2, (4 * hidden_dim, hidden_dim), jnp.float32, -k, k)
        b_ih = jax.random.uniform(k3, (4 * hidden_dim,), jnp.float32, -k, k)
        b_hh = jax.random.uniform(k4, (4 * hidden_dim,), jnp.float32, -k, k)
        params["layers"].append({
            # pre-transposed for (rows, K) @ (K, 4H) matmuls in the kernel
            "w_ih_t": w_ih.T.astype(weight_dtype),   # (in_dim, 4H)
            "w_hh_t": w_hh.T.astype(weight_dtype),   # (H, 4H)
            "bias": (b_ih + b_hh)[None, :],          # (1, 4H), kept f32
        })
    key, k1, k2 = jax.random.split(key, 3)
    w_fc = jax.random.uniform(k1, (output_dim, hidden_dim), jnp.float32, -k, k)
    b_fc = jax.random.uniform(k2, (output_dim,), jnp.float32, -k, k)
    params["fc_w_t"] = w_fc.T.astype(weight_dtype)   # (H, O)
    params["fc_b"] = b_fc[None, :]                   # (1, O), kept f32
    return params


@jax.jit
def lstm_forward(params, x_btd):
    """Equivalent of LSTM.forward: x (B, T, D) -> (B, output_dim)."""
    return lstm_forward_impl(params, x_btd)


# ----------------------------- pure-JAX reference ------------------------------

def lstm_forward_ref(params, x_btd):
    B, T, _ = x_btd.shape
    x = x_btd
    hp = jax.lax.Precision.HIGHEST
    for lp in params["layers"]:
        H = lp["w_hh_t"].shape[0]
        h = jnp.zeros((B, H), jnp.float32)
        c = jnp.zeros((B, H), jnp.float32)
        outs = []
        for t in range(T):
            gates = (jnp.dot(x[:, t, :], lp["w_ih_t"].astype(jnp.float32), precision=hp)
                     + jnp.dot(h, lp["w_hh_t"].astype(jnp.float32), precision=hp)
                     + lp["bias"])
            i_g = jax.nn.sigmoid(gates[:, 0 * H:1 * H])
            f_g = jax.nn.sigmoid(gates[:, 1 * H:2 * H])
            g_g = jnp.tanh(gates[:, 2 * H:3 * H])
            o_g = jax.nn.sigmoid(gates[:, 3 * H:4 * H])
            c = f_g * c + i_g * g_g
            h = o_g * jnp.tanh(c)
            outs.append(h)
        x = jnp.stack(outs, axis=1)
    return (jnp.dot(x[:, -1, :], params["fc_w_t"].astype(jnp.float32), precision=hp)
            + params["fc_b"])


# ----------------------------------- main --------------------------------------

if __name__ == "__main__":
    # small shapes consistent with the module
    batch, seq = 2, 8
    input_dim, hidden_dim, output_dim, layer_num = 16, 32, 8, 2

    key = jax.random.PRNGKey(0)
    key, kx, kp = jax.random.split(key, 3)
    x = jax.random.normal(kx, (batch, seq, input_dim), jnp.float32)
    params = init_lstm_params(kp, input_dim, hidden_dim, output_dim, layer_num)

    out = lstm_forward(params, x)
    out = jax.block_until_ready(out)

    ref = lstm_forward_ref(params, x)
    assert out.shape == (batch, output_dim)
    assert jnp.allclose(out, ref, atol=1e-5, rtol=1e-5), (
        f"mismatch: max abs err {jnp.max(jnp.abs(out - ref))}")

    print("KERNEL_OK")
</pallas_src>

<mosaic_0001>
module attributes {stable_mosaic.version = 11 : i64} {
  func.func @_lstm_fc_kernel(%arg0: i32, %arg1: memref<16x32xf32, #tpu.memory_space<vmem>>, %arg2: memref<1x32x128xf32, #tpu.memory_space<vmem>>, %arg3: memref<1x32x128xf32, #tpu.memory_space<vmem>>, %arg4: memref<1x1x128xf32, #tpu.memory_space<vmem>>, %arg5: memref<32x8xf32, #tpu.memory_space<vmem>>, %arg6: memref<1x8xf32, #tpu.memory_space<vmem>>, %arg7: memref<2x8xf32, #tpu.memory_space<vmem>>, %arg8: memref<16x32xf32, #tpu.memory_space<vmem>>, %arg9: memref<16x128xf32, #tpu.memory_space<vmem>>) attributes {dimension_semantics = [#tpu.dimension_semantics<arbitrary>], iteration_bounds = array<i64: 2>, scalar_prefetch = 0 : i64, scratch_operands = 2 : i64, tpu.core_type = #tpu.core_type<tc>, window_params = [{pipeline_mode = #tpu.pipeline_mode<synchronous>, transform_indices = @transform_0, window_bounds = array<i64: 16, 32>}, {transform_indices = @transform_1, window_bounds = array<i64: 1, 32, 128>}, {transform_indices = @transform_2, window_bounds = array<i64: 1, 32, 128>}, {transform_indices = @transform_3, window_bounds = array<i64: 1, 1, 128>}, {pipeline_mode = #tpu.pipeline_mode<synchronous>, transform_indices = @transform_4, window_bounds = array<i64: 32, 8>}, {pipeline_mode = #tpu.pipeline_mode<synchronous>, transform_indices = @transform_5, window_bounds = array<i64: 1, 8>}, {pipeline_mode = #tpu.pipeline_mode<synchronous>, transform_indices = @transform_6, window_bounds = array<i64: 2, 8>}]} {
    %c0_i32 = arith.constant 0 : i32
    %0 = arith.cmpi eq, %arg0, %c0_i32 : i32
    %1 = arith.extui %0 : i1 to i32
    %c0_i32_0 = arith.constant 0 : i32
    %2 = arith.cmpi ne, %1, %c0_i32_0 : i32
    scf.if %2 {
      %c0_74 = arith.constant 0 : index
      %c0_75 = arith.constant 0 : index
      %283 = vector.load %arg1[%c0_74, %c0_75] : memref<16x32xf32, #tpu.memory_space<vmem>>, vector<16x32xf32>
      %c0_76 = arith.constant 0 : index
      %c0_77 = arith.constant 0 : index
      %284 = vector.load %arg8[%c0_76, %c0_77] : memref<16x32xf32, #tpu.memory_space<vmem>>, vector<16x32xf32>
      tpu.vector_store %arg8[%c0_76, %c0_77], %283 {strides = array<i32>} : memref<16x32xf32, #tpu.memory_space<vmem>>, vector<16x32xf32>,
    } else {
    }
    %c0 = arith.constant 0 : index
    %c0_1 = arith.constant 0 : index
    %c0_2 = arith.constant 0 : index
    %3 = vector.load %arg2[%c0, %c0_1, %c0_2] : memref<1x32x128xf32, #tpu.memory_space<vmem>>, vector<1x32x128xf32>
    %4 = vector.shape_cast %3 : vector<1x32x128xf32> to vector<32x128xf32>
    %c0_3 = arith.constant 0 : index
    %c0_4 = arith.constant 0 : index
    %c0_5 = arith.constant 0 : index
    %5 = vector.load %arg3[%c0_3, %c0_4, %c0_5] : memref<1x32x128xf32, #tpu.memory_space<vmem>>, vector<1x32x128xf32>
    %6 = vector.shape_cast %5 : vector<1x32x128xf32> to vector<32x128xf32>
    %c0_6 = arith.constant 0 : index
    %c0_7 = arith.constant 0 : index
    %c0_8 = arith.constant 0 : index
    %7 = vector.load %arg4[%c0_6, %c0_7, %c0_8] : memref<1x1x128xf32, #tpu.memory_space<vmem>>, vector<1x1x128xf32>
    %8 = vector.shape_cast %7 : vector<1x1x128xf32> to vector<1x128xf32>
    %c0_9 = arith.constant 0 : index
    %c0_10 = arith.constant 0 : index
    %9 = vector.load %arg8[%c0_9, %c0_10] : memref<16x32xf32, #tpu.memory_space<vmem>>, vector<16x32xf32>
    %cst = arith.constant dense<0.000000e+00> : vector<16x128xf32>
    %10 = tpu.matmul %9, %4, %cst {dimension_numbers = #tpu.dot_dimension_numbers<[1], [0], [0], [1], [0, 0, 1, 1], [], []>} : vector<16x32xf32>, vector<32x128xf32>, vector<16x128xf32> -> vector<16x128xf32>
    %11 = vector.broadcast %8 : vector<1x128xf32> to vector<16x128xf32>
    %12 = arith.addf %10, %11 : vector<16x128xf32>
    %c0_11 = arith.constant 0 : index
    %c0_12 = arith.constant 0 : index
    %13 = vector.load %arg9[%c0_11, %c0_12] : memref<16x128xf32, #tpu.memory_space<vmem>>, vector<16x128xf32>
    tpu.vector_store %arg9[%c0_11, %c0_12], %12 {strides = array<i32>} : memref<16x128xf32, #tpu.memory_space<vmem>>, vector<16x128xf32>,
    %cst_13 = arith.constant 0.000000e+00 : f32
    %14 = vector.broadcast %cst_13 : f32 to vector<2x32xf32>
    %cst_14 = arith.constant 0.000000e+00 : f32
    %15 = vector.broadcast %cst_14 : f32 to vector<2x32xf32>
    %c0_i32_15 = arith.constant 0 : i32
    %c2_i32 = arith.constant 2 : i32
    %16 = arith.muli %c0_i32_15, %c2_i32 : i32
    %17 = tpu.assume_multiple %16, 2 : i32
    %18 = arith.index_cast %17 : i32 to index
    %c0_16 = arith.constant 0 : index
    %19 = vector.load %arg9[%18, %c0_16] : memref<16x128xf32, #tpu.memory_space<vmem>>, vector<2x128xf32>
    %cst_17 = arith.constant dense<0.000000e+00> : vector<2x128xf32>
    %20 = tpu.matmul %14, %6, %cst_17 {dimension_numbers = #tpu.dot_dimension_numbers<[1], [0], [0], [1], [0, 0, 1, 1], [], []>} : vector<2x32xf32>, vector<32x128xf32>, vector<2x128xf32> -> vector<2x128xf32>
    %21 = arith.addf %19, %20 : vector<2x128xf32>
    %22 = vector.extract_strided_slice %21 {offsets = [0, 0], sizes = [2, 32], strides = [1, 1]} : vector<2x128xf32> to vector<2x32xf32>
    %23 = arith.negf %22 : vector<2x32xf32>
    %24 = math.exp %23 : vector<2x32xf32>
    %cst_18 = arith.constant 1.000000e+00 : f32
    %25 = vector.broadcast %cst_18 : f32 to vector<2x32xf32>
    %26 = arith.addf %25, %24 : vector<2x32xf32>
    %27 = arith.divf %25, %26 : vector<2x32xf32>
    %28 = vector.extract_strided_slice %21 {offsets = [0, 32], sizes = [2, 32], strides = [1, 1]} : vector<2x128xf32> to vector<2x32xf32>
    %29 = arith.negf %28 : vector<2x32xf32>
    %30 = math.exp %29 : vector<2x32xf32>
    %cst_19 = arith.constant 1.000000e+00 : f32
    %31 = vector.broadcast %cst_19 : f32 to vector<2x32xf32>
    %32 = arith.addf %31, %30 : vector<2x32xf32>
    %33 = arith.divf %31, %32 : vector<2x32xf32>
    %34 = vector.extract_strided_slice %21 {offsets = [0, 64], sizes = [2, 32], strides = [1, 1]} : vector<2x128xf32> to vector<2x32xf32>
    %35 = math.tanh %34 : vector<2x32xf32>
    %36 = vector.extract_strided_slice %21 {offsets = [0, 96], sizes = [2, 32], strides = [1, 1]} : vector<2x128xf32> to vector<2x32xf32>
    %37 = arith.negf %36 : vector<2x32xf32>
    %38 = math.exp %37 : vector<2x32xf32>
    %cst_20 = arith.constant 1.000000e+00 : f32
    %39 = vector.broadcast %cst_20 : f32 to vector<2x32xf32>
    %40 = arith.addf %39, %38 : vector<2x32xf32>
    %41 = arith.divf %39, %40 : vector<2x32xf32>
    %42 = arith.mulf %33, %15 : vector<2x32xf32>
    %43 = arith.mulf %27, %35 : vector<2x32xf32>
    %44 = arith.addf %42, %43 : vector<2x32xf32>
    %45 = math.tanh %44 : vector<2x32xf32>
    %46 = arith.mulf %41, %45 : vector<2x32xf32>
    %47 = arith.index_cast %17 : i32 to index
    %c0_21 = arith.constant 0 : index
    %48 = vector.load %arg8[%47, %c0_21] : memref<16x32xf32, #tpu.memory_space<vmem>>, vector<2x32xf32>
    tpu.vector_store %arg8[%47, %c0_21], %46 {strides = array<i32>} : memref<16x32xf32, #tpu.memory_space<vmem>>, vector<2x32xf32>,
    %c1_i32 = arith.constant 1 : i32
    %c2_i32_22 = arith.constant 2 : i32
    %49 = arith.muli %c1_i32, %c2_i32_22 : i32
    %50 = tpu.assume_multiple %49, 2 : i32
    %51 = arith.index_cast %50 : i32 to index
    %c0_23 = arith.constant 0 : index
    %52 = vector.load %arg9[%51, %c0_23] : memref<16x128xf32, #tpu.memory_space<vmem>>, vector<2x128xf32>
    %cst_24 = arith.constant dense<0.000000e+00> : vector<2x128xf32>
    %53 = tpu.matmul %46, %6, %cst_24 {dimension_numbers = #tpu.dot_dimension_numbers<[1], [0], [0], [1], [0, 0, 1, 1], [], []>} : vector<2x32xf32>, vector<32x128xf32>, vector<2x128xf32> -> vector<2x128xf32>
    %54 = arith.addf %52, %53 : vector<2x128xf32>
    %55 = vector.extract_strided_slice %54 {offsets = [0, 0], sizes = [2, 32], strides = [1, 1]} : vector<2x128xf32> to vector<2x32xf32>
    %56 = arith.negf %55 : vector<2x32xf32>
    %57 = math.exp %56 : vector<2x32xf32>
    %cst_25 = arith.constant 1.000000e+00 : f32
    %58 = vector.broadcast %cst_25 : f32 to vector<2x32xf32>
    %59 = arith.addf %58, %57 : vector<2x32xf32>
    %60 = arith.divf %58, %59 : vector<2x32xf32>
    %61 = vector.extract_strided_slice %54 {offsets = [0, 32], sizes = [2, 32], strides = [1, 1]} : vector<2x128xf32> to vector<2x32xf32>
    %62 = arith.negf %61 : vector<2x32xf32>
    %63 = math.exp %62 : vector<2x32xf32>
    %cst_26 = arith.constant 1.000000e+00 : f32
    %64 = vector.broadcast %cst_26 : f32 to vector<2x32xf32>
    %65 = arith.addf %64, %63 : vector<2x32xf32>
    %66 = arith.divf %64, %65 : vector<2x32xf32>
    %67 = vector.extract_strided_slice %54 {offsets = [0, 64], sizes = [2, 32], strides = [1, 1]} : vector<2x128xf32> to vector<2x32xf32>
    %68 = math.tanh %67 : vector<2x32xf32>
    %69 = vector.extract_strided_slice %54 {offsets = [0, 96], sizes = [2, 32], strides = [1, 1]} : vector<2x128xf32> to vector<2x32xf32>
    %70 = arith.negf %69 : vector<2x32xf32>
    %71 = math.exp %70 : vector<2x32xf32>
    %cst_27 = arith.constant 1.000000e+00 : f32
    %72 = vector.broadcast %cst_27 : f32 to vector<2x32xf32>
    %73 = arith.addf %72, %71 : vector<2x32xf32>
    %74 = arith.divf %72, %73 : vector<2x32xf32>
    %75 = arith.mulf %66, %44 : vector<2x32xf32>
    %76 = arith.mulf %60, %68 : vector<2x32xf32>
    %77 = arith.addf %75, %76 : vector<2x32xf32>
    %78 = math.tanh %77 : vector<2x32xf32>
    %79 = arith.mulf %74, %78 : vector<2x32xf32>
    %80 = arith.index_cast %50 : i32 to index
    %c0_28 = arith.constant 0 : index
    %81 = vector.load %arg8[%80, %c0_28] : memref<16x32xf32, #tpu.memory_space<vmem>>, vector<2x32xf32>
    tpu.vector_store %arg8[%80, %c0_28], %79 {strides = array<i32>} : memref<16x32xf32, #tpu.memory_space<vmem>>, vector<2x32xf32>,
    %c2_i32_29 = arith.constant 2 : i32
    %c2_i32_30 = arith.constant 2 : i32
    %82 = arith.muli %c2_i32_29, %c2_i32_30 : i32
    %83 = tpu.assume_multiple %82, 2 : i32
    %84 = arith.index_cast %83 : i32 to index
    %c0_31 = arith.constant 0 : index
    %85 = vector.load %arg9[%84, %c0_31] : memref<16x128xf32, #tpu.memory_space<vmem>>, vector<2x128xf32>
    %cst_32 = arith.constant dense<0.000000e+00> : vector<2x128xf32>
    %86 = tpu.matmul %79, %6, %cst_32 {dimension_numbers = #tpu.dot_dimension_numbers<[1], [0], [0], [1], [0, 0, 1, 1], [], []>} : vector<2x32xf32>, vector<32x128xf32>, vector<2x128xf32> -> vector<2x128xf32>
    %87 = arith.addf %85, %86 : vector<2x128xf32>
    %88 = vector.extract_strided_slice %87 {offsets = [0, 0], sizes = [2, 32], strides = [1, 1]} : vector<2x128xf32> to vector<2x32xf32>
    %89 = arith.negf %88 : vector<2x32xf32>
    %90 = math.exp %89 : vector<2x32xf32>
    %cst_33 = arith.constant 1.000000e+00 : f32
    %91 = vector.broadcast %cst_33 : f32 to vector<2x32xf32>
    %92 = arith.addf %91, %90 : vector<2x32xf32>
    %93 = arith.divf %91, %92 : vector<2x32xf32>
    %94 = vector.extract_strided_slice %87 {offsets = [0, 32], sizes = [2, 32], strides = [1, 1]} : vector<2x128xf32> to vector<2x32xf32>
    %95 = arith.negf %94 : vector<2x32xf32>
    %96 = math.exp %95 : vector<2x32xf32>
    %cst_34 = arith.constant 1.000000e+00 : f32
    %97 = vector.broadcast %cst_34 : f32 to vector<2x32xf32>
    %98 = arith.addf %97, %96 : vector<2x32xf32>
    %99 = arith.divf %97, %98 : vector<2x32xf32>
    %100 = vector.extract_strided_slice %87 {offsets = [0, 64], sizes = [2, 32], strides = [1, 1]} : vector<2x128xf32> to vector<2x32xf32>
    %101 = math.tanh %100 : vector<2x32xf32>
    %102 = vector.extract_strided_slice %87 {offsets = [0, 96], sizes = [2, 32], strides = [1, 1]} : vector<2x128xf32> to vector<2x32xf32>
    %103 = arith.negf %102 : vector<2x32xf32>
    %104 = math.exp %103 : vector<2x32xf32>
    %cst_35 = arith.constant 1.000000e+00 : f32
    %105 = vector.broadcast %cst_35 : f32 to vector<2x32xf32>
    %106 = arith.addf %105, %104 : vector<2x32xf32>
    %107 = arith.divf %105, %106 : vector<2x32xf32>
    %108 = arith.mulf %99, %77 : vector<2x32xf32>
    %109 = arith.mulf %93, %101 : vector<2x32xf32>
    %110 = arith.addf %108, %109 : vector<2x32xf32>
    %111 = math.tanh %110 : vector<2x32xf32>
    %112 = arith.mulf %107, %111 : vector<2x32xf32>
    %113 = arith.index_cast %83 : i32 to index
    %c0_36 = arith.constant 0 : index
    %114 = vector.load %arg8[%113, %c0_36] : memref<16x32xf32, #tpu.memory_space<vmem>>, vector<2x32xf32>
    tpu.vector_store %arg8[%113, %c0_36], %112 {strides = array<i32>} : memref<16x32xf32, #tpu.memory_space<vmem>>, vector<2x32xf32>,
    %c3_i32 = arith.constant 3 : i32
    %c2_i32_37 = arith.constant 2 : i32
    %115 = arith.muli %c3_i32, %c2_i32_37 : i32
    %116 = tpu.assume_multiple %115, 2 : i32
    %117 = arith.index_cast %116 : i32 to index
    %c0_38 = arith.constant 0 : index
    %118 = vector.load %arg9[%117, %c0_38] : memref<16x128xf32, #tpu.memory_space<vmem>>, vector<2x128xf32>
    %cst_39 = arith.constant dense<0.000000e+00> : vector<2x128xf32>
    %119 = tpu.matmul %112, %6, %cst_39 {dimension_numbers = #tpu.dot_dimension_numbers<[1], [0], [0], [1], [0, 0, 1, 1], [], []>} : vector<2x32xf32>, vector<32x128xf32>, vector<2x128xf32> -> vector<2x128xf32>
    %120 = arith.addf %118, %119 : vector<2x128xf32>
    %121 = vector.extract_strided_slice %120 {offsets = [0, 0], sizes = [2, 32], strides = [1, 1]} : vector<2x128xf32> to vector<2x32xf32>
    %122 = arith.negf %121 : vector<2x32xf32>
    %123 = math.exp %122 : vector<2x32xf32>
    %cst_40 = arith.constant 1.000000e+00 : f32
    %124 = vector.broadcast %cst_40 : f32 to vector<2x32xf32>
    %125 = arith.addf %124, %123 : vector<2x32xf32>
    %126 = arith.divf %124, %125 : vector<2x32xf32>
    %127 = vector.extract_strided_slice %120 {offsets = [0, 32], sizes = [2, 32], strides = [1, 1]} : vector<2x128xf32> to vector<2x32xf32>
    %128 = arith.negf %127 : vector<2x32xf32>
    %129 = math.exp %128 : vector<2x32xf32>
    %cst_41 = arith.constant 1.000000e+00 : f32
    %130 = vector.broadcast %cst_41 : f32 to vector<2x32xf32>
    %131 = arith.addf %130, %129 : vector<2x32xf32>
    %132 = arith.divf %130, %131 : vector<2x32xf32>
    %133 = vector.extract_strided_slice %120 {offsets = [0, 64], sizes = [2, 32], strides = [1, 1]} : vector<2x128xf32> to vector<2x32xf32>
    %134 = math.tanh %133 : vector<2x32xf32>
    %135 = vector.extract_strided_slice %120 {offsets = [0, 96], sizes = [2, 32], strides = [1, 1]} : vector<2x128xf32> to vector<2x32xf32>
    %136 = arith.negf %135 : vector<2x32xf32>
    %137 = math.exp %136 : vector<2x32xf32>
    %cst_42 = arith.constant 1.000000e+00 : f32
    %138 = vector.broadcast %cst_42 : f32 to vector<2x32xf32>
    %139 = arith.addf %138, %137 : vector<2x32xf32>
    %140 = arith.divf %138, %139 : vector<2x32xf32>
    %141 = arith.mulf %132, %110 : vector<2x32xf32>
    %142 = arith.mulf %126, %134 : vector<2x32xf32>
    %143 = arith.addf %141, %142 : vector<2x32xf32>
    %144 = math.tanh %143 : vector<2x32xf32>
    %145 = arith.mulf %140, %144 : vector<2x32xf32>
    %146 = arith.index_cast %116 : i32 to index
    %c0_43 = arith.constant 0 : index
    %147 = vector.load %arg8[%146, %c0_43] : memref<16x32xf32, #tpu.memory_space<vmem>>, vector<2x32xf32>
    tpu.vector_store %arg8[%146, %c0_43], %145 {strides = array<i32>} : memref<16x32xf32, #tpu.memory_space<vmem>>, vector<2x32xf32>,
    %c4_i32 = arith.constant 4 : i32
    %c2_i32_44 = arith.constant 2 : i32
    %148 = arith.muli %c4_i32, %c2_i32_44 : i32
    %149 = tpu.assume_multiple %148, 2 : i32
    %150 = arith.index_cast %149 : i32 to index
    %c0_45 = arith.constant 0 : index
    %151 = vector.load %arg9[%150, %c0_45] : memref<16x128xf32, #tpu.memory_space<vmem>>, vector<2x128xf32>
    %cst_46 = arith.constant dense<0.000000e+00> : vector<2x128xf32>
    %152 = tpu.matmul %145, %6, %cst_46 {dimension_numbers = #tpu.dot_dimension_numbers<[1], [0], [0], [1], [0, 0, 1, 1], [], []>} : vector<2x32xf32>, vector<32x128xf32>, vector<2x128xf32> -> vector<2x128xf32>
    %153 = arith.addf %151, %152 : vector<2x128xf32>
    %154 = vector.extract_strided_slice %153 {offsets = [0, 0], sizes = [2, 32], strides = [1, 1]} : vector<2x128xf32> to vector<2x32xf32>
    %155 = arith.negf %154 : vector<2x32xf32>
    %156 = math.exp %155 : vector<2x32xf32>
    %cst_47 = arith.constant 1.000000e+00 : f32
    %157 = vector.broadcast %cst_47 : f32 to vector<2x32xf32>
    %158 = arith.addf %157, %156 : vector<2x32xf32>
    %159 = arith.divf %157, %158 : vector<2x32xf32>
    %160 = vector.extract_strided_slice %153 {offsets = [0, 32], sizes = [2, 32], strides = [1, 1]} : vector<2x128xf32> to vector<2x32xf32>
    %161 = arith.negf %160 : vector<2x32xf32>
    %162 = math.exp %161 : vector<2x32xf32>
    %cst_48 = arith.constant 1.000000e+00 : f32
    %163 = vector.broadcast %cst_48 : f32 to vector<2x32xf32>
    %164 = arith.addf %163, %162 : vector<2x32xf32>
    %165 = arith.divf %163, %164 : vector<2x32xf32>
    %166 = vector.extract_strided_slice %153 {offsets = [0, 64], sizes = [2, 32], strides = [1, 1]} : vector<2x128xf32> to vector<2x32xf32>
    %167 = math.tanh %166 : vector<2x32xf32>
    %168 = vector.extract_strided_slice %153 {offsets = [0, 96], sizes = [2, 32], strides = [1, 1]} : vector<2x128xf32> to vector<2x32xf32>
    %169 = arith.negf %168 : vector<2x32xf32>
    %170 = math.exp %169 : vector<2x32xf32>
    %cst_49 = arith.constant 1.000000e+00 : f32
    %171 = vector.broadcast %cst_49 : f32 to vector<2x32xf32>
    %172 = arith.addf %171, %170 : vector<2x32xf32>
    %173 = arith.divf %171, %172 : vector<2x32xf32>
    %174 = arith.mulf %165, %143 : vector<2x32xf32>
    %175 = arith.mulf %159, %167 : vector<2x32xf32>
    %176 = arith.addf %174, %175 : vector<2x32xf32>
    %177 = math.tanh %176 : vector<2x32xf32>
    %178 = arith.mulf %173, %177 : vector<2x32xf32>
    %179 = arith.index_cast %149 : i32 to index
    %c0_50 = arith.constant 0 : index
    %180 = vector.load %arg8[%179, %c0_50] : memref<16x32xf32, #tpu.memory_space<vmem>>, vector<2x32xf32>
    tpu.vector_store %arg8[%179, %c0_50], %178 {strides = array<i32>} : memref<16x32xf32, #tpu.memory_space<vmem>>, vector<2x32xf32>,
    %c5_i32 = arith.constant 5 : i32
    %c2_i32_51 = arith.constant 2 : i32
    %181 = arith.muli %c5_i32, %c2_i32_51 : i32
    %182 = tpu.assume_multiple %181, 2 : i32
    %183 = arith.index_cast %182 : i32 to index
    %c0_52 = arith.constant 0 : index
    %184 = vector.load %arg9[%183, %c0_52] : memref<16x128xf32, #tpu.memory_space<vmem>>, vector<2x128xf32>
    %cst_53 = arith.constant dense<0.000000e+00> : vector<2x128xf32>
    %185 = tpu.matmul %178, %6, %cst_53 {dimension_numbers = #tpu.dot_dimension_numbers<[1], [0], [0], [1], [0, 0, 1, 1], [], []>} : vector<2x32xf32>, vector<32x128xf32>, vector<2x128xf32> -> vector<2x128xf32>
    %186 = arith.addf %184, %185 : vector<2x128xf32>
    %187 = vector.extract_strided_slice %186 {offsets = [0, 0], sizes = [2, 32], strides = [1, 1]} : vector<2x128xf32> to vector<2x32xf32>
    %188 = arith.negf %187 : vector<2x32xf32>
    %189 = math.exp %188 : vector<2x32xf32>
    %cst_54 = arith.constant 1.000000e+00 : f32
    %190 = vector.broadcast %cst_54 : f32 to vector<2x32xf32>
    %191 = arith.addf %190, %189 : vector<2x32xf32>
    %192 = arith.divf %190, %191 : vector<2x32xf32>
    %193 = vector.extract_strided_slice %186 {offsets = [0, 32], sizes = [2, 32], strides = [1, 1]} : vector<2x128xf32> to vector<2x32xf32>
    %194 = arith.negf %193 : vector<2x32xf32>
    %195 = math.exp %194 : vector<2x32xf32>
    %cst_55 = arith.constant 1.000000e+00 : f32
    %196 = vector.broadcast %cst_55 : f32 to vector<2x32xf32>
    %197 = arith.addf %196, %195 : vector<2x32xf32>
    %198 = arith.divf %196, %197 : vector<2x32xf32>
    %199 = vector.extract_strided_slice %186 {offsets = [0, 64], sizes = [2, 32], strides = [1, 1]} : vector<2x128xf32> to vector<2x32xf32>
    %200 = math.tanh %199 : vector<2x32xf32>
    %201 = vector.extract_strided_slice %186 {offsets = [0, 96], sizes = [2, 32], strides = [1, 1]} : vector<2x128xf32> to vector<2x32xf32>
    %202 = arith.negf %201 : vector<2x32xf32>
    %203 = math.exp %202 : vector<2x32xf32>
    %cst_56 = arith.constant 1.000000e+00 : f32
    %204 = vector.broadcast %cst_56 : f32 to vector<2x32xf32>
    %205 = arith.addf %204, %203 : vector<2x32xf32>
    %206 = arith.divf %204, %205 : vector<2x32xf32>
    %207 = arith.mulf %198, %176 : vector<2x32xf32>
    %208 = arith.mulf %192, %200 : vector<2x32xf32>
    %209 = arith.addf %207, %208 : vector<2x32xf32>
    %210 = math.tanh %209 : vector<2x32xf32>
    %211 = arith.mulf %206, %210 : vector<2x32xf32>
    %212 = arith.index_cast %182 : i32 to index
    %c0_57 = arith.constant 0 : index
    %213 = vector.load %arg8[%212, %c0_57] : memref<16x32xf32, #tpu.memory_space<vmem>>, vector<2x32xf32>
    tpu.vector_store %arg8[%212, %c0_57], %211 {strides = array<i32>} : memref<16x32xf32, #tpu.memory_space<vmem>>, vector<2x32xf32>,
    %c6_i32 = arith.constant 6 : i32
    %c2_i32_58 = arith.constant 2 : i32
    %214 = arith.muli %c6_i32, %c2_i32_58 : i32
    %215 = tpu.assume_multiple %214, 2 : i32
    %216 = arith.index_cast %215 : i32 to index
    %c0_59 = arith.constant 0 : index
    %217 = vector.load %arg9[%216, %c0_59] : memref<16x128xf32, #tpu.memory_space<vmem>>, vector<2x128xf32>
    %cst_60 = arith.constant dense<0.000000e+00> : vector<2x128xf32>
    %218 = tpu.matmul %211, %6, %cst_60 {dimension_numbers = #tpu.dot_dimension_numbers<[1], [0], [0], [1], [0, 0, 1, 1], [], []>} : vector<2x32xf32>, vector<32x128xf32>, vector<2x128xf32> -> vector<2x128xf32>
    %219 = arith.addf %217, %218 : vector<2x128xf32>
    %220 = vector.extract_strided_slice %219 {offsets = [0, 0], sizes = [2, 32], strides = [1, 1]} : vector<2x128xf32> to vector<2x32xf32>
    %221 = arith.negf %220 : vector<2x32xf32>
    %222 = math.exp %221 : vector<2x32xf32>
    %cst_61 = arith.constant 1.000000e+00 : f32
    %223 = vector.broadcast %cst_61 : f32 to vector<2x32xf32>
    %224 = arith.addf %223, %222 : vector<2x32xf32>
    %225 = arith.divf %223, %224 : vector<2x32xf32>
    %226 = vector.extract_strided_slice %219 {offsets = [0, 32], sizes = [2, 32], strides = [1, 1]} : vector<2x128xf32> to vector<2x32xf32>
    %227 = arith.negf %226 : vector<2x32xf32>
    %228 = math.exp %227 : vector<2x32xf32>
    %cst_62 = arith.constant 1.000000e+00 : f32
    %229 = vector.broadcast %cst_62 : f32 to vector<2x32xf32>
    %230 = arith.addf %229, %228 : vector<2x32xf32>
    %231 = arith.divf %229, %230 : vector<2x32xf32>
    %232 = vector.extract_strided_slice %219 {offsets = [0, 64], sizes = [2, 32], strides = [1, 1]} : vector<2x128xf32> to vector<2x32xf32>
    %233 = math.tanh %232 : vector<2x32xf32>
    %234 = vector.extract_strided_slice %219 {offsets = [0, 96], sizes = [2, 32], strides = [1, 1]} : vector<2x128xf32> to vector<2x32xf32>
    %235 = arith.negf %234 : vector<2x32xf32>
    %236 = math.exp %235 : vector<2x32xf32>
    %cst_63 = arith.constant 1.000000e+00 : f32
    %237 = vector.broadcast %cst_63 : f32 to vector<2x32xf32>
    %238 = arith.addf %237, %236 : vector<2x32xf32>
    %239 = arith.divf %237, %238 : vector<2x32xf32>
    %240 = arith.mulf %231, %209 : vector<2x32xf32>
    %241 = arith.mulf %225, %233 : vector<2x32xf32>
    %242 = arith.addf %240, %241 : vector<2x32xf32>
    %243 = math.tanh %242 : vector<2x32xf32>
    %244 = arith.mulf %239, %243 : vector<2x32xf32>
    %245 = arith.index_cast %215 : i32 to index
    %c0_64 = arith.constant 0 : index
    %246 = vector.load %arg8[%245, %c0_64] : memref<16x32xf32, #tpu.memory_space<vmem>>, vector<2x32xf32>
    tpu.vector_store %arg8[%245, %c0_64], %244 {strides = array<i32>} : memref<16x32xf32, #tpu.memory_space<vmem>>, vector<2x32xf32>,
    %c7_i32 = arith.constant 7 : i32
    %c2_i32_65 = arith.constant 2 : i32
    %247 = arith.muli %c7_i32, %c2_i32_65 : i32
    %248 = tpu.assume_multiple %247, 2 : i32
    %249 = arith.index_cast %248 : i32 to index
    %c0_66 = arith.constant 0 : index
    %250 = vector.load %arg9[%249, %c0_66] : memref<16x128xf32, #tpu.memory_space<vmem>>, vector<2x128xf32>
    %cst_67 = arith.constant dense<0.000000e+00> : vector<2x128xf32>
    %251 = tpu.matmul %244, %6, %cst_67 {dimension_numbers = #tpu.dot_dimension_numbers<[1], [0], [0], [1], [0, 0, 1, 1], [], []>} : vector<2x32xf32>, vector<32x128xf32>, vector<2x128xf32> -> vector<2x128xf32>
    %252 = arith.addf %250, %251 : vector<2x128xf32>
    %253 = vector.extract_strided_slice %252 {offsets = [0, 0], sizes = [2, 32], strides = [1, 1]} : vector<2x128xf32> to vector<2x32xf32>
    %254 = arith.negf %253 : vector<2x32xf32>
    %255 = math.exp %254 : vector<2x32xf32>
    %cst_68 = arith.constant 1.000000e+00 : f32
    %256 = vector.broadcast %cst_68 : f32 to vector<2x32xf32>
    %257 = arith.addf %256, %255 : vector<2x32xf32>
    %258 = arith.divf %256, %257 : vector<2x32xf32>
    %259 = vector.extract_strided_slice %252 {offsets = [0, 32], sizes = [2, 32], strides = [1, 1]} : vector<2x128xf32> to vector<2x32xf32>
    %260 = arith.negf %259 : vector<2x32xf32>
    %261 = math.exp %260 : vector<2x32xf32>
    %cst_69 = arith.constant 1.000000e+00 : f32
    %262 = vector.broadcast %cst_69 : f32 to vector<2x32xf32>
    %263 = arith.addf %262, %261 : vector<2x32xf32>
    %264 = arith.divf %262, %263 : vector<2x32xf32>
    %265 = vector.extract_strided_slice %252 {offsets = [0, 64], sizes = [2, 32], strides = [1, 1]} : vector<2x128xf32> to vector<2x32xf32>
    %266 = math.tanh %265 : vector<2x32xf32>
    %267 = vector.extract_strided_slice %252 {offsets = [0, 96], sizes = [2, 32], strides = [1, 1]} : vector<2x128xf32> to vector<2x32xf32>
    %268 = arith.negf %267 : vector<2x32xf32>
    %269 = math.exp %268 : vector<2x32xf32>
    %cst_70 = arith.constant 1.000000e+00 : f32
    %270 = vector.broadcast %cst_70 : f32 to vector<2x32xf32>
    %271 = arith.addf %270, %269 : vector<2x32xf32>
    %272 = arith.divf %270, %271 : vector<2x32xf32>
    %273 = arith.mulf %264, %242 : vector<2x32xf32>
    %274 = arith.mulf %258, %266 : vector<2x32xf32>
    %275 = arith.addf %273, %274 : vector<2x32xf32>
    %276 = math.tanh %275 : vector<2x32xf32>
    %277 = arith.mulf %272, %276 : vector<2x32xf32>
    %278 = arith.index_cast %248 : i32 to index
    %c0_71 = arith.constant 0 : index
    %279 = vector.load %arg8[%278, %c0_71] : memref<16x32xf32, #tpu.memory_space<vmem>>, vector<2x32xf32>
    tpu.vector_store %arg8[%278, %c0_71], %277 {strides = array<i32>} : memref<16x32xf32, #tpu.memory_space<vmem>>, vector<2x32xf32>,
    %c8_i32 = arith.constant 8 : i32
    %c1_i32_72 = arith.constant 1 : i32
    %280 = arith.cmpi eq, %arg0, %c1_i32_72 : i32
    %281 = arith.extui %280 : i1 to i32
    %c0_i32_73 = arith.constant 0 : i32
    %282 = arith.cmpi ne, %281, %c0_i32_73 : i32
    scf.if %282 {
      %c0_74 = arith.constant 0 : index
      %c0_75 = arith.constant 0 : index
      %283 = vector.load %arg5[%c0_74, %c0_75] : memref<32x8xf32, #tpu.memory_space<vmem>>, vector<32x8xf32>
      %cst_76 = arith.constant dense<0.000000e+00> : vector<2x8xf32>
      %284 = tpu.matmul %277, %283, %cst_76 {dimension_numbers = #tpu.dot_dimension_numbers<[1], [0], [0], [1], [0, 0, 1, 1], [], []>} : vector<2x32xf32>, vector<32x8xf32>, vector<2x8xf32> -> vector<2x8xf32>
      %c0_77 = arith.constant 0 : index
      %c0_78 = arith.constant 0 : index
      %285 = vector.load %arg6[%c0_77, %c0_78] : memref<1x8xf32, #tpu.memory_space<vmem>>, vector<1x8xf32>
      %286 = vector.broadcast %285 : vector<1x8xf32> to vector<2x8xf32>
      %287 = arith.addf %284, %286 : vector<2x8xf32>
      %c0_79 = arith.constant 0 : index
      %c0_80 = arith.constant 0 : index
      %288 = vector.load %arg7[%c0_79, %c0_80] : memref<2x8xf32, #tpu.memory_space<vmem>>, vector<2x8xf32>
      tpu.vector_store %arg7[%c0_79, %c0_80], %287 {strides = array<i32>} : memref<2x8xf32, #tpu.memory_space<vmem>>, vector<2x8xf32>,
    } else {
    }
    return
  }
  func.func @transform_0(%arg0: i32) -> (i32, i32) {
    %c0_i32 = arith.constant 0 : i32
    %c0_i32_0 = arith.constant 0 : i32
    %c0_i32_1 = arith.constant 0 : i32
    return %c0_i32, %c0_i32_0 : i32, i32
  }
  func.func @transform_1(%arg0: i32) -> (i32, i32, i32) {
    %c0_i32 = arith.constant 0 : i32
    %c0_i32_0 = arith.constant 0 : i32
    %c0_i32_1 = arith.constant 0 : i32
    return %arg0, %c0_i32, %c0_i32_0 : i32, i32, i32
  }
  func.func @transform_2(%arg0: i32) -> (i32, i32, i32) {
    %c0_i32 = arith.constant 0 : i32
    %c0_i32_0 = arith.constant 0 : i32
    %c0_i32_1 = arith.constant 0 : i32
    return %arg0, %c0_i32, %c0_i32_0 : i32, i32, i32
  }
  func.func @transform_3(%arg0: i32) -> (i32, i32, i32) {
    %c0_i32 = arith.constant 0 : i32
    %c0_i32_0 = arith.constant 0 : i32
    %c0_i32_1 = arith.constant 0 : i32
    return %arg0, %c0_i32, %c0_i32_0 : i32, i32, i32
  }
  func.func @transform_4(%arg0: i32) -> (i32, i32) {
    %c0_i32 = arith.constant 0 : i32
    %c0_i32_0 = arith.constant 0 : i32
    %c0_i32_1 = arith.constant 0 : i32
    return %c0_i32, %c0_i32_0 : i32, i32
  }
  func.func @transform_5(%arg0: i32) -> (i32, i32) {
    %c0_i32 = arith.constant 0 : i32
    %c0_i32_0 = arith.constant 0 : i32
    %c0_i32_1 = arith.constant 0 : i32
    return %c0_i32, %c0_i32_0 : i32, i32
  }
  func.func @transform_6(%arg0: i32) -> (i32, i32) {
    %c0_i32 = arith.constant 0 : i32
    %c0_i32_0 = arith.constant 0 : i32
    %c0_i32_1 = arith.constant 0 : i32
    return %c0_i32, %c0_i32_0 : i32, i32
  }
}

</mosaic_0001>

<llo_original>
// kernel: lstm_forward.1
$region0: #{lstm_forward.1}
  #allocation0 [shape = 'u32[]', space=smem, size = 0x4, offset = 0x4, fixed_abs, tag = 'smem constant byte address 0x4 - core index']
  #allocation1 [shape = 'u32[144,128]{1,0:T(1,128)}', space=vmem, size = 0x12000, scoped, tag = 'internal scratch']
  #allocation2 [shape = 'f32[16,32]{1,0:T(8,128)}', space=vmem, size = 0x2000, scoped, tag = 'scratch operand']
  #allocation3 [shape = 'f32[16,128]{1,0:T(8,128)}', space=vmem, size = 0x2000, scoped, tag = 'scratch operand']
  %s0 = inlined_call_operand.vmem [shape: f32[16,32], index: 0, kind: input, shape index: {}]
  %s1 = inlined_call_operand.vmem [shape: f32[2,32,128], index: 1, kind: input, shape index: {}]
  %s2 = inlined_call_operand.vmem [shape: f32[2,32,128], index: 2, kind: input, shape index: {}]
  %s3 = inlined_call_operand.vmem [shape: f32[2,1,128], index: 3, kind: input, shape index: {}]
  %s4 = inlined_call_operand.vmem [shape: f32[32,8], index: 4, kind: input, shape index: {}]
  %s5 = inlined_call_operand.vmem [shape: f32[1,8], index: 5, kind: input, shape index: {}]
  %s6 = inlined_call_operand.hbm [shape: f32[2,8], index: 6, kind: output, shape index: {}]
  %s7 = sld [smem:[#allocation0]]
  $region65: #{lstm_forward.1} parent=0
    _
  %s9 = ssub.s32 1, %s7
  %s10 = scalar_select 0, %s9, %s7
  $region1: #{lstm_forward.1} parent=0
    #allocation4 [shape = 'u8[1024]{0}', space=vmem, size = 0x400, scoped, tag = 'output window, operand 0, single buffered']
    #allocation5 [shape = 's32[2]{0}', space=sflag, size = 0x8, scoped, tag = 'scoped memory for lstm_forward.1']
    %11 = vsyncpa [#allocation5], 0
    loop: start=0, step=1, limit=4
    $region2: #{lstm_forward.1} parent=1 // loop_pre_header
      _
    $region3: #{lstm_forward.1} parent=1 // loop_header
      %s13 = sphi 0, %s17
      %p14 = scmp.ge.s32.totalorder %s13, 4
      %s21 = sphi 0, %s21
      %s23 = sphi 0, %s21
      %s24 = sphi 0, %s23
      %s38 = sphi 0, %s24
      %s44 = sphi 0, %s46
      %s47 = sphi 0, %s44
      %s48 = sphi 0, %s47
      %s64 = sphi 0, %s48
      %s70 = sphi 0, %s72
      %s73 = sphi 0, %s70
      %s74 = sphi 0, %s73
      %s90 = sphi 0, %s74
      %s96 = sphi 0, %s98
      %s99 = sphi 0, %s96
      %s100 = sphi 0, %s99
      %s116 = sphi 0, %s100
      %s120 = sphi 0, %s120
      %s122 = sphi 0, %s120
      %s123 = sphi 0, %s122
      %s137 = sphi 0, %s123
      %s141 = sphi 0, %s141
      %s143 = sphi 0, %s141
      %s144 = sphi 0, %s143
      %s158 = sphi 0, %s144
      %s162 = sphi 0, %s162
      %s164 = sphi 0, %s162
      %s165 = sphi 0, %s164
      %s179 = sphi 0, %s165
    $region4: #{lstm_forward.1} parent=1 // loop_header_branch
      %16 = sbr.rel (%p14) target = $region8
    $region5: #{lstm_forward.1} parent=1 // loop_body
      %s18 = ssub.s32 %s13, 1
      %s19 = ssub.s32 %s13, 2
      %s20 = sadd.s32 %s13, 1
      %s22 = sadd.s32 %s21, 1
      %p25 = scmp.eq.s32.totalorder %s13, 1
      %p26 = scmp.ne.s32.totalorder %s21, %s23
      %p27 = scmp.eq.s32.totalorder %s13, 0
      %p28 = por %p26, %p27
      %p29 = scmp.ne.s32.totalorder %s21, %s23
      %p30 = scmp.eq.s32.totalorder %s18, 1
      %p31 = por %p29, %p30
      %p32 = scmp.ne.s32.totalorder %s23, %s24
      %p33 = scmp.eq.s32.totalorder %s18, 0
      %p34 = por %p32, %p33
      %p35 = scmp.ne.s32.totalorder %s23, %s24
      %p36 = scmp.eq.s32.totalorder %s19, 1
      %p37 = por %p35, %p36
      %p39 = scmp.ne.s32.totalorder %s24, %s38
      %p40 = scmp.eq.s32.totalorder %s19, 0
      %p41 = por %p39, %p40
      %s42 = ssub.s32 %s13, %s20
      %p43 = scmp.eq.s32.totalorder %s42, 0
      %s45 = sadd.s32 %s44, 1
      %s46 = scalar_select %p43, %s44, %s45
      %p49 = pneg %p43
      %p50 = scmp.eq.s32.totalorder %s13, 1
      %p51 = por %p49, %p50
      %p52 = scmp.ne.s32.totalorder %s44, %s47
      %p53 = scmp.eq.s32.totalorder %s13, 0
      %p54 = por %p52, %p53
      %p55 = scmp.ne.s32.totalorder %s44, %s47
      %p56 = scmp.eq.s32.totalorder %s18, 1
      %p57 = por %p55, %p56
      %p58 = scmp.ne.s32.totalorder %s47, %s48
      %p59 = scmp.eq.s32.totalorder %s18, 0
      %p60 = por %p58, %p59
      %p61 = scmp.ne.s32.totalorder %s47, %s48
      %p62 = scmp.eq.s32.totalorder %s19, 1
      %p63 = por %p61, %p62
      %p65 = scmp.ne.s32.totalorder %s48, %s64
      %p66 = scmp.eq.s32.totalorder %s19, 0
      %p67 = por %p65, %p66
      %s68 = ssub.s32 %s13, %s20
      %p69 = scmp.eq.s32.totalorder %s68, 0
      %s71 = sadd.s32 %s70, 1
      %s72 = scalar_select %p69, %s70, %s71
      %p75 = pneg %p69
      %p76 = scmp.eq.s32.totalorder %s13, 1
      %p77 = por %p75, %p76
      %p78 = scmp.ne.s32.totalorder %s70, %s73
      %p79 = scmp.eq.s32.totalorder %s13, 0
      %p80 = por %p78, %p79
      %p81 = scmp.ne.s32.totalorder %s70, %s73
      %p82 = scmp.eq.s32.totalorder %s18, 1
      %p83 = por %p81, %p82
      %p84 = scmp.ne.s32.totalorder %s73, %s74
      %p85 = scmp.eq.s32.totalorder %s18, 0
      %p86 = por %p84, %p85
      %p87 = scmp.ne.s32.totalorder %s73, %s74
      %p88 = scmp.eq.s32.totalorder %s19, 1
      %p89 = por %p87, %p88
      %p91 = scmp.ne.s32.totalorder %s74, %s90
      %p92 = scmp.eq.s32.totalorder %s19, 0
      %p93 = por %p91, %p92
      %s94 = ssub.s32 %s13, %s20
      %p95 = scmp.eq.s32.totalorder %s94, 0
      %s97 = sadd.s32 %s96, 1
      %s98 = scalar_select %p95, %s96, %s97
      %p101 = pneg %p95
      %p102 = scmp.eq.s32.totalorder %s13, 1
      %p103 = por %p101, %p102
      %p104 = scmp.ne.s32.totalorder %s96, %s99
      %p105 = scmp.eq.s32.totalorder %s13, 0
      %p106 = por %p104, %p105
      %p107 = scmp.ne.s32.totalorder %s96, %s99
      %p108 = scmp.eq.s32.totalorder %s18, 1
      %p109 = por %p107, %p108
      %p110 = scmp.ne.s32.totalorder %s99, %s100
      %p111 = scmp.eq.s32.totalorder %s18, 0
      %p112 = por %p110, %p111
      %p113 = scmp.ne.s32.totalorder %s99, %s100
      %p114 = scmp.eq.s32.totalorder %s19, 1
      %p115 = por %p113, %p114
      %p117 = scmp.ne.s32.totalorder %s100, %s116
      %p118 = scmp.eq.s32.totalorder %s19, 0
      %p119 = por %p117, %p118
      %s121 = sadd.s32 %s120, 1
      %p124 = scmp.eq.s32.totalorder %s13, 1
      %p125 = scmp.ne.s32.totalorder %s120, %s122
      %p126 = scmp.eq.s32.totalorder %s13, 0
      %p127 = por %p125, %p126
      %p128 = scmp.ne.s32.totalorder %s120, %s122
      %p129 = scmp.eq.s32.totalorder %s18, 1
      %p130 = por %p128, %p129
      %p131 = scmp.ne.s32.totalorder %s122, %s123
      %p132 = scmp.eq.s32.totalorder %s18, 0
      %p133 = por %p131, %p132
      %p134 = scmp.ne.s32.totalorder %s122, %s123
      %p135 = scmp.eq.s32.totalorder %s19, 1
      %p136 = por %p134, %p135
      %p138 = scmp.ne.s32.totalorder %s123, %s137
      %p139 = scmp.eq.s32.totalorder %s19, 0
      %p140 = por %p138, %p139
      %s142 = sadd.s32 %s141, 1
      %p145 = scmp.eq.s32.totalorder %s13, 1
      %p146 = scmp.ne.s32.totalorder %s141, %s143
      %p147 = scmp.eq.s32.totalorder %s13, 0
      %p148 = por %p146, %p147
      %p149 = scmp.ne.s32.totalorder %s141, %s143
      %p150 = scmp.eq.s32.totalorder %s18, 1
      %p151 = por %p149, %p150
      %p152 = scmp.ne.s32.totalorder %s143, %s144
      %p153 = scmp.eq.s32.totalorder %s18, 0
      %p154 = por %p152, %p153
      %p155 = scmp.ne.s32.totalorder %s143, %s144
      %p156 = scmp.eq.s32.totalorder %s19, 1
      %p157 = por %p155, %p156
      %p159 = scmp.ne.s32.totalorder %s144, %s158
      %p160 = scmp.eq.s32.totalorder %s19, 0
      %p161 = por %p159, %p160
      %s163 = sadd.s32 %s162, 1
      %p166 = scmp.eq.s32.totalorder %s13, 1
      %p167 = scmp.ne.s32.totalorder %s162, %s164
      %p168 = scmp.eq.s32.totalorder %s13, 0
      %p169 = por %p167, %p168
      %p170 = scmp.ne.s32.totalorder %s162, %s164
      %p171 = scmp.eq.s32.totalorder %s18, 1
      %p172 = por %p170, %p171
      %p173 = scmp.ne.s32.totalorder %s164, %s165
      %p174 = scmp.eq.s32.totalorder %s18, 0
      %p175 = por %p173, %p174
      %p176 = scmp.ne.s32.totalorder %s164, %s165
      %p177 = scmp.eq.s32.totalorder %s19, 1
      %p178 = por %p176, %p177
      %p180 = scmp.ne.s32.totalorder %s165, %s179
      %p181 = scmp.eq.s32.totalorder %s19, 0
      %p182 = por %p180, %p181
      %p183 = scmp.le.s32.totalorder 1, %s13
      %p184 = scmp.lt.s32.totalorder %s13, 3
      %p185 = pnand %p183, %p184
      %p186 = pneg %p185
      // Predicated region
      $region9: #{lstm_forward.1} parent=5 // pred_check
        _
      $region10: #{lstm_forward.1} parent=5 // pred_check_branch
        %188 = sbr.rel (%p185) target = $region12
      $region11: #{lstm_forward.1} parent=5 // pred_region
        %s189 = ssub.s32 %s13, 1
        // Predicated region
        $region13: #{lstm_forward.1} parent=11 // pred_check
          %p190 = pneg %p34
        $region14: #{lstm_forward.1} parent=11 // pred_check_branch
          %192 = sbr.rel (%p190) target = $region16
        $region15: #{lstm_forward.1} parent=11 // pred_region
          _
        $region16: #{lstm_forward.1} parent=11 // pred_fallthru
          _
        // Predicated region
        $region17: #{lstm_forward.1} parent=11 // pred_check
          %p193 = pneg %p133
        $region18: #{lstm_forward.1} parent=11 // pred_check_branch
          %195 = sbr.rel (%p193) target = $region20
        $region19: #{lstm_forward.1} parent=11 // pred_region
          _
        $region20: #{lstm_forward.1} parent=11 // pred_fallthru
          _
        // Predicated region
        $region21: #{lstm_forward.1} parent=11 // pred_check
          %p196 = pneg %p154
        $region22: #{lstm_forward.1} parent=11 // pred_check_branch
          %198 = sbr.rel (%p196) target = $region24
        $region23: #{lstm_forward.1} parent=11 // pred_region
          _
        $region24: #{lstm_forward.1} parent=11 // pred_fallthru
          _
      $region12: #{lstm_forward.1} parent=5 // pred_fallthru
        _
      %p199 = scmp.lt.s32.totalorder %s13, 2
      // Predicated region
      $region25: #{lstm_forward.1} parent=5 // pred_check
        %p200 = pneg %p199
      $region26: #{lstm_forward.1} parent=5 // pred_check_branch
        %202 = sbr.rel (%p200) target = $region28
      $region27: #{lstm_forward.1} parent=5 // pred_region
        // Predicated region
        $region29: #{lstm_forward.1} parent=27 // pred_check
          %p203 = pneg %p54
        $region30: #{lstm_forward.1} parent=27 // pred_check_branch
          %205 = sbr.rel (%p203) target = $region32
        $region31: #{lstm_forward.1} parent=27 // pred_region
          %p206 = scmp.lt.s32.totalorder %s13, 1
          %s207 = scalar_select %p206, %s13, 1
          %s208 = smul.addr %s207, 4
          %s209 = smul.addr %s208, 8
          %s210 = scalar_lea.vmem %s1, %s209
        $region32: #{lstm_forward.1} parent=27 // pred_fallthru
          _
        // Predicated region
        $region33: #{lstm_forward.1} parent=27 // pred_check
          %p211 = pneg %p80
        $region34: #{lstm_forward.1} parent=27 // pred_check_branch
          %213 = sbr.rel (%p211) target = $region36
        $region35: #{lstm_forward.1} parent=27 // pred_region
          %p214 = scmp.lt.s32.totalorder %s13, 1
          %s215 = scalar_select %p214, %s13, 1
          %s216 = smul.addr %s215, 4
          %s217 = smul.addr %s216, 8
          %s218 = scalar_lea.vmem %s2, %s217
        $region36: #{lstm_forward.1} parent=27 // pred_fallthru
          _
        // Predicated region
        $region37: #{lstm_forward.1} parent=27 // pred_check
          %p219 = pneg %p106
        $region38: #{lstm_forward.1} parent=27 // pred_check_branch
          %221 = sbr.rel (%p219) target = $region40
        $region39: #{lstm_forward.1} parent=27 // pred_region
          %p222 = scmp.lt.s32.totalorder %s13, 1
          %s223 = scalar_select %p222, %s13, 1
          %s224 = scalar_lea.vmem %s3, %s223
        $region40: #{lstm_forward.1} parent=27 // pred_fallthru
          _
      $region28: #{lstm_forward.1} parent=5 // pred_fallthru
        _
      %p225 = scmp.le.s32.totalorder 1, %s13
      %p226 = scmp.lt.s32.totalorder %s13, 3
      %p227 = pnand %p225, %p226
      %p228 = pneg %p227
      // Predicated region
      $region41: #{lstm_forward.1} parent=5 // pred_check
        _
      $region42: #{lstm_forward.1} parent=5 // pred_check_branch
        %230 = sbr.rel (%p227) target = $region44
      $region43: #{lstm_forward.1} parent=5 // pred_region
        %s231 = ssub.s32 %s13, 1
        %p232 = pneg %p34
        %p233 = pneg %p31
        %p234 = scmp.lt.s32.totalorder %s18, 1
        %s235 = scalar_select %p234, %s18, 1
        %s236 = smul.addr %s235, 4
        %s237 = smul.addr %s236, 8
        %s238 = scalar_lea.vmem %s1, %s237
        %p239 = pneg %p60
        %p240 = pneg %p57
        %p241 = scmp.lt.s32.totalorder %s18, 1
        %s242 = scalar_select %p241, %s18, 1
        %s243 = smul.addr %s242, 4
        %s244 = smul.addr %s243, 8
        %s245 = scalar_lea.vmem %s2, %s244
        %p246 = pneg %p86
        %p247 = pneg %p83
        %p248 = scmp.lt.s32.totalorder %s18, 1
        %s249 = scalar_select %p248, %s18, 1
        %s250 = scalar_lea.vmem %s3, %s249
        %p251 = pneg %p112
        %p252 = pneg %p109
        %p253 = pneg %p133
        %p254 = pneg %p130
        %p255 = pneg %p154
        %p256 = pneg %p151
        %p257 = pneg %p175
        %p258 = pneg %p172
        %p259 = scmp.lt.s32.totalorder %s18, 1
        %s260 = scalar_select %p259, %s18, 1
        %s261 = smul.addr %s260, 4
        %s262 = smul.addr %s261, 8
        %s263 = scalar_lea.vmem %s1, %s262
        %p264 = scmp.lt.s32.totalorder %s18, 1
        %s265 = scalar_select %p264, %s18, 1
        %s266 = smul.addr %s265, 4
        %s267 = smul.addr %s266, 8
        %s268 = scalar_lea.vmem %s2, %s267
        %p269 = scmp.lt.s32.totalorder %s18, 1
        %s270 = scalar_select %p269, %s18, 1
        %s271 = scalar_lea.vmem %s3, %s270
        %p272 = scmp.eq.s32.totalorder %s18, 0
        // Predicated region
        $region45: #{lstm_forward.1} parent=43 // pred_check
          %p273 = pneg %p272
        $region46: #{lstm_forward.1} parent=43 // pred_check_branch
          %275 = sbr.rel (%p273) target = $region48
        $region47: #{lstm_forward.1} parent=43 // pred_region
          %v276 = vld [vmem:[%s0] sm:$0xff]
          %v277 = vld [vmem:[%s0 + $0x8] sm:$0xff]
          %vm278 = vcmask 261120
          %279 = vst.msk [vmem:[#allocation2] sm:$0xff] %vm278, %v276
          %280 = vst.msk [vmem:[#allocation2 + $0x8] sm:$0xff] %vm278, %v277
        $region48: #{lstm_forward.1} parent=43 // pred_fallthru
          _
        %v281 = vld [vmem:[%s263] sm:$0xff]
        %v282 = vld [vmem:[%s263 + $0x8] sm:$0xff]
        %v283 = vld [vmem:[%s263 + $0x10] sm:$0xff]
        %v284 = vld [vmem:[%s263 + $0x18] sm:$0xff]
        %v285 = vld [vmem:[%s268] sm:$0xff]
        %v286 = vld [vmem:[%s268 + $0x8] sm:$0xff]
        %v287 = vld [vmem:[%s268 + $0x10] sm:$0xff]
        %v288 = vld [vmem:[%s268 + $0x18] sm:$0xff]
        %v289 = vld [vmem:[%s271] sm:$0x1]
        %v290 = vld [vmem:[#allocation2] sm:$0xff]
        %v291 = vld [vmem:[#allocation2 + $0x8] sm:$0xff]
        %v293 = vlaneseq
        %v294 = vshrl.u32 %v293, 7
        %v295 = vsub.s32 0, %v294
        %v296 = vrot.slane %v289, %v295
        %vm298 = vcmask 261120
        %v300 = vsel %vm298, %v290, 0
        %v303 = vsel %vm298, %v291, 0
        %305 = vmatprep.subr.mxu0 0.0
        %306 = vmatpush1.msra.mxu0 0.0
        %307 = vmatprep.subr.mxu0 0.0
        %308 = vmatpush1.msra.mxu0 0.0
        %309 = vmatprep.subr.mxu0 0.0
        %310 = vmatpush1.msra.mxu0 0.0
        %311 = vmatprep.subr.mxu0 0.0
        %312 = vmatpush1.msra.mxu0 0.0
        %313 = vmatprep.subr.mxu0 0.0
        %314 = vmatpush1.msra.mxu0 0.0
        %315 = vmatprep.subr.mxu0 0.0
        %316 = vmatpush1.msra.mxu0 0.0
        %317 = vmatprep.subr.mxu0 0.0
        %318 = vmatpush1.msra.mxu0 0.0
        %319 = vmatprep.subr.mxu0 0.0
        %320 = vmatpush1.msra.mxu0 0.0
        %321 = vmatprep.subr.mxu0 0.0
        %322 = vmatpush1.msra.mxu0 0.0
        %323 = vmatprep.subr.mxu0 0.0
        %324 = vmatpush1.msra.mxu0 0.0
        %325 = vmatprep.subr.mxu0 0.0
        %326 = vmatpush1.msra.mxu0 0.0
        %327 = vmatprep.subr.mxu0 0.0
        %328 = vmatpush1.msra.mxu0 0.0
        %329 = vmatprep.subr.mxu0 0.0
        %330 = vmatpush1.msra.mxu0 %v284
        %331 = vmatprep.subr.mxu0 0.0
        %332 = vmatpush1.msra.mxu0 %v283
        %333 = vmatprep.subr.mxu0 0.0
        %334 = vmatpush1.msra.mxu0 %v282
        %335 = vmatprep.subr.mxu0 0.0
        %336 = vmatpush1.msra.mxu0 %v281
        %337 = vmatprep.subr.mxu0 0.0
        %338 = vmatpush2.msra.mxu0 0.0
        %339 = vmatprep.subr.mxu0 0.0
        %340 = vmatpush2.msra.mxu0 0.0
        %341 = vmatprep.subr.mxu0 0.0
        %342 = vmatpush2.msra.mxu0 0.0
        %343 = vmatprep.subr.mxu0 0.0
        %344 = vmatpush2.msra.mxu0 0.0
        %345 = vmatprep.subr.mxu0 0.0
        %346 = vmatpush2.msra.mxu0 0.0
        %347 = vmatprep.subr.mxu0 0.0
        %348 = vmatpush2.msra.mxu0 0.0
        %349 = vmatprep.subr.mxu0 0.0
        %350 = vmatpush2.msra.mxu0 0.0
        %351 = vmatprep.subr.mxu0 0.0
        %352 = vmatpush2.msra.mxu0 0.0
        %353 = vmatprep.subr.mxu0 0.0
        %354 = vmatpush2.msra.mxu0 0.0
        %355 = vmatprep.subr.mxu0 0.0
        %356 = vmatpush2.msra.mxu0 0.0
        %357 = vmatprep.subr.mxu0 0.0
        %358 = vmatpush2.msra.mxu0 0.0
        %359 = vmatprep.subr.mxu0 0.0
        %360 = vmatpush2.msra.mxu0 0.0
        %361 = vmatprep.subr.mxu0 0.0
        %362 = vmatpush2.msra.mxu0 0.0
        %363 = vmatprep.subr.mxu0 0.0
        %364 = vmatpush2.msra.mxu0 0.0
        %365 = vmatprep.subr.mxu0 0.0
        %366 = vmatpush2.msra.mxu0 0.0
        %367 = vmatprep.subr.mxu0 0.0
        %368 = vmatpush2.msra.mxu0 0.0
        %369 = vmatprep.mubr.f32.mxu0 0.0
        %370 = vmatmul.mubr.f32.gmra.mxu0 %v300
        %v371 = vpop.f32.mrf.mxu0
        %v372 = vadd.f32 %v296, %v371
        %v373 = vpop.f32.mrf.mxu0
        %374 = vmatprep.mubr.f32.mxu0 0.0
        %375 = vmatmul.mubr.f32.gmra.mxu0 %v303
        %v376 = vpop.f32.mrf.mxu0
        %v377 = vadd.f32 %v296, %v376
        %v378 = vpop.f32.mrf.mxu0
        %379 = vdwg.mxu0
        %380 = vst [vmem:[#allocation3] sm:$0xff] %v372
        %381 = vst [vmem:[#allocation3 + $0x8] sm:$0xff] %v377
        %v382 = vld [vmem:[#allocation3] sm:$0x3]
        %v384 = vsel %vm298, 0.0, 0
        %386 = vmatprep.subr.mxu0 0.0
        %387 = vmatpush1.msra.mxu0 0.0
        %388 = vmatprep.subr.mxu0 0.0
        %389 = vmatpush1.msra.mxu0 0.0
        %390 = vmatprep.subr.mxu0 0.0
        %391 = vmatpush1.msra.mxu0 0.0
        %392 = vmatprep.subr.mxu0 0.0
        %393 = vmatpush1.msra.mxu0 0.0
        %394 = vmatprep.subr.mxu0 0.0
        %395 = vmatpush1.msra.mxu0 0.0
        %396 = vmatprep.subr.mxu0 0.0
        %397 = vmatpush1.msra.mxu0 0.0
        %398 = vmatprep.subr.mxu0 0.0
        %399 = vmatpush1.msra.mxu0 0.0
        %400 = vmatprep.subr.mxu0 0.0
        %401 = vmatpush1.msra.mxu0 0.0
        %402 = vmatprep.subr.mxu0 0.0
        %403 = vmatpush1.msra.mxu0 0.0
        %404 = vmatprep.subr.mxu0 0.0
        %405 = vmatpush1.msra.mxu0 0.0
        %406 = vmatprep.subr.mxu0 0.0
        %407 = vmatpush1.msra.mxu0 0.0
        %408 = vmatprep.subr.mxu0 0.0
        %409 = vmatpush1.msra.mxu0 0.0
        %410 = vmatprep.subr.mxu0 0.0
        %411 = vmatpush1.msra.mxu0 %v288
        %412 = vmatprep.subr.mxu0 0.0
        %413 = vmatpush1.msra.mxu0 %v287
        %414 = vmatprep.subr.mxu0 0.0
        %415 = vmatpush1.msra.mxu0 %v286
        %416 = vmatprep.subr.mxu0 0.0
        %417 = vmatpush1.msra.mxu0 %v285
        %418 = vmatprep.subr.mxu0 0.0
        %419 = vmatpush2.msra.mxu0 0.0
        %420 = vmatprep.subr.mxu0 0.0
        %421 = vmatpush2.msra.mxu0 0.0
        %422 = vmatprep.subr.mxu0 0.0
        %423 = vmatpush2.msra.mxu0 0.0
        %424 = vmatprep.subr.mxu0 0.0
        %425 = vmatpush2.msra.mxu0 0.0
        %426 = vmatprep.subr.mxu0 0.0
        %427 = vmatpush2.msra.mxu0 0.0
        %428 = vmatprep.subr.mxu0 0.0
        %429 = vmatpush2.msra.mxu0 0.0
        %430 = vmatprep.subr.mxu0 0.0
        %431 = vmatpush2.msra.mxu0 0.0
        %432 = vmatprep.subr.mxu0 0.0
        %433 = vmatpush2.msra.mxu0 0.0
        %434 = vmatprep.subr.mxu0 0.0
        %435 = vmatpush2.msra.mxu0 0.0
        %436 = vmatprep.subr.mxu0 0.0
        %437 = vmatpush2.msra.mxu0 0.0
        %438 = vmatprep.subr.mxu0 0.0
        %439 = vmatpush2.msra.mxu0 0.0
        %440 = vmatprep.subr.mxu0 0.0
        %441 = vmatpush2.msra.mxu0 0.0
        %442 = vmatprep.subr.mxu0 0.0
        %443 = vmatpush2.msra.mxu0 0.0
        %444 = vmatprep.subr.mxu0 0.0
        %445 = vmatpush2.msra.mxu0 0.0
        %446 = vmatprep.subr.mxu0 0.0
        %447 = vmatpush2.msra.mxu0 0.0
        %448 = vmatprep.subr.mxu0 0.0
        %449 = vmatpush2.msra.mxu0 0.0
        %450 = vmatprep.mubr.f32.mxu0 0.0
        %451 = vmatmul.mubr.f32.gmra.mxu0 %v384
        %v452 = vpop.f32.mrf.mxu0
        %v453 = vadd.f32 0.0, %v452
        %v454 = vpop.f32.mrf.mxu0
        %455 = vdwg.mxu0
        %v456 = vadd.f32 %v382, %v453
        %v457 = vxor.u32 %v456, 2147483648
        %v458 = vmul.f32 %v457, 1.442695
        %v459 = vpow.pop %v458
        %v460 = vadd.f32 %v459, 1.0
        %v461 = vrcp.pop %v460
        %v462 = vmul.f32 1.0, %v461
        %v463 = vtanh.pop %v456
        %v464 = vmul.f32 %v462, 0.0
        %466 = vrot.lane.b32.xlu0 %v463, 64
        %v467 = vpop.permute.xlu0 %466
        %v469 = vmul.f32 %v462, %v467
        %471 = vrot.lane.b32.xlu0 %v469, 32
        %v472 = vpop.permute.xlu0 %471
        %v474 = vadd.f32 %v464, %v472
        %v475 = vtanh.pop %v474
        %477 = vrot.lane.b32.xlu0 %v475, 64
        %v478 = vpop.permute.xlu0 %477
        %v480 = vmul.f32 %v462, %v478
        %482 = vrot.lane.b32.xlu0 %v480, 32
        %v483 = vpop.permute.xlu0 %482
        %vm485 = vcmask 254976
        %486 = vst.msk [vmem:[#allocation2] sm:$0x3] %vm485, %v483
        %s487 = scalar_lea.vmem [#allocation3], 2
        %v488 = vld [vmem:[%s487] sm:$0x3]
        %v489 = vsel %vm298, %v483, 0
        %491 = vmatprep.subr.mxu0 0.0
        %492 = vmatpush1.msra.mxu0 0.0
        %493 = vmatprep.subr.mxu0 0.0
        %494 = vmatpush1.msra.mxu0 0.0
        %495 = vmatprep.subr.mxu0 0.0
        %496 = vmatpush1.msra.mxu0 0.0
        %497 = vmatprep.subr.mxu0 0.0
        %498 = vmatpush1.msra.mxu0 0.0
        %499 = vmatprep.subr.mxu0 0.0
        %500 = vmatpush1.msra.mxu0 0.0
        %501 = vmatprep.subr.mxu0 0.0
        %502 = vmatpush1.msra.mxu0 0.0
        %503 = vmatprep.subr.mxu0 0.0
        %504 = vmatpush1.msra.mxu0 0.0
        %505 = vmatprep.subr.mxu0 0.0
        %506 = vmatpush1.msra.mxu0 0.0
        %507 = vmatprep.subr.mxu0 0.0
        %508 = vmatpush1.msra.mxu0 0.0
        %509 = vmatprep.subr.mxu0 0.0
        %510 = vmatpush1.msra.mxu0 0.0
        %511 = vmatprep.subr.mxu0 0.0
        %512 = vmatpush1.msra.mxu0 0.0
        %513 = vmatprep.subr.mxu0 0.0
        %514 = vmatpush1.msra.mxu0 0.0
        %515 = vmatprep.subr.mxu0 0.0
        %516 = vmatpush1.msra.mxu0 %v288
        %517 = vmatprep.subr.mxu0 0.0
        %518 = vmatpush1.msra.mxu0 %v287
        %519 = vmatprep.subr.mxu0 0.0
        %520 = vmatpush1.msra.mxu0 %v286
        %521 = vmatprep.subr.mxu0 0.0
        %522 = vmatpush1.msra.mxu0 %v285
        %523 = vmatprep.subr.mxu0 0.0
        %524 = vmatpush2.msra.mxu0 0.0
        %525 = vmatprep.subr.mxu0 0.0
        %526 = vmatpush2.msra.mxu0 0.0
        %527 = vmatprep.subr.mxu0 0.0
        %528 = vmatpush2.msra.mxu0 0.0
        %529 = vmatprep.subr.mxu0 0.0
        %530 = vmatpush2.msra.mxu0 0.0
        %531 = vmatprep.subr.mxu0 0.0
        %532 = vmatpush2.msra.mxu0 0.0
        %533 = vmatprep.subr.mxu0 0.0
        %534 = vmatpush2.msra.mxu0 0.0
        %535 = vmatprep.subr.mxu0 0.0
        %536 = vmatpush2.msra.mxu0 0.0
        %537 = vmatprep.subr.mxu0 0.0
        %538 = vmatpush2.msra.mxu0 0.0
        %539 = vmatprep.subr.mxu0 0.0
        %540 = vmatpush2.msra.mxu0 0.0
        %541 = vmatprep.subr.mxu0 0.0
        %542 = vmatpush2.msra.mxu0 0.0
        %543 = vmatprep.subr.mxu0 0.0
        %544 = vmatpush2.msra.mxu0 0.0
        %545 = vmatprep.subr.mxu0 0.0
        %546 = vmatpush2.msra.mxu0 0.0
        %547 = vmatprep.subr.mxu0 0.0
        %548 = vmatpush2.msra.mxu0 0.0
        %549 = vmatprep.subr.mxu0 0.0
        %550 = vmatpush2.msra.mxu0 0.0
        %551 = vmatprep.subr.mxu0 0.0
        %552 = vmatpush2.msra.mxu0 0.0
        %553 = vmatprep.subr.mxu0 0.0
        %554 = vmatpush2.msra.mxu0 0.0
        %555 = vmatprep.mubr.f32.mxu0 0.0
        %556 = vmatmul.mubr.f32.gmra.mxu0 %v489
        %v557 = vpop.f32.mrf.mxu0
        %v558 = vadd.f32 0.0, %v557
        %v559 = vpop.f32.mrf.mxu0
        %560 = vdwg.mxu0
        %v561 = vadd.f32 %v488, %v558
        %v562 = vxor.u32 %v561, 2147483648
        %v563 = vmul.f32 %v562, 1.442695
        %v564 = vpow.pop %v563
        %v565 = vadd.f32 %v564, 1.0
        %v566 = vrcp.pop %v565
        %v567 = vmul.f32 1.0, %v566
        %v568 = vtanh.pop %v561
        %v569 = vmul.f32 %v567, %v474
        %571 = vrot.lane.b32.xlu0 %v568, 64
        %v572 = vpop.permute.xlu0 %571
        %v574 = vmul.f32 %v567, %v572
        %576 = vrot.lane.b32.xlu0 %v574, 32
        %v577 = vpop.permute.xlu0 %576
        %v579 = vadd.f32 %v569, %v577
        %v580 = vtanh.pop %v579
        %582 = vrot.lane.b32.xlu0 %v580, 64
        %v583 = vpop.permute.xlu0 %582
        %v585 = vmul.f32 %v567, %v583
        %587 = vrot.lane.b32.xlu0 %v585, 32
        %v588 = vpop.permute.xlu0 %587
        %s590 = scalar_lea.vmem [#allocation2], 2
        %591 = vst.msk [vmem:[%s590] sm:$0x3] %vm485, %v588
        %s592 = scalar_lea.vmem [#allocation3], 4
        %v593 = vld [vmem:[%s592] sm:$0x3]
        %v594 = vsel %vm298, %v588, 0
        %596 = vmatprep.subr.mxu0 0.0
        %597 = vmatpush1.msra.mxu0 0.0
        %598 = vmatprep.subr.mxu0 0.0
        %599 = vmatpush1.msra.mxu0 0.0
        %600 = vmatprep.subr.mxu0 0.0
        %601 = vmatpush1.msra.mxu0 0.0
        %602 = vmatprep.subr.mxu0 0.0
        %603 = vmatpush1.msra.mxu0 0.0
        %604 = vmatprep.subr.mxu0 0.0
        %605 = vmatpush1.msra.mxu0 0.0
        %606 = vmatprep.subr.mxu0 0.0
        %607 = vmatpush1.msra.mxu0 0.0
        %608 = vmatprep.subr.mxu0 0.0
        %609 = vmatpush1.msra.mxu0 0.0
        %610 = vmatprep.subr.mxu0 0.0
        %611 = vmatpush1.msra.mxu0 0.0
        %612 = vmatprep.subr.mxu0 0.0
        %613 = vmatpush1.msra.mxu0 0.0
        %614 = vmatprep.subr.mxu0 0.0
        %615 = vmatpush1.msra.mxu0 0.0
        %616 = vmatprep.subr.mxu0 0.0
        %617 = vmatpush1.msra.mxu0 0.0
        %618 = vmatprep.subr.mxu0 0.0
        %619 = vmatpush1.msra.mxu0 0.0
        %620 = vmatprep.subr.mxu0 0.0
        %621 = vmatpush1.msra.mxu0 %v288
        %622 = vmatprep.subr.mxu0 0.0
        %623 = vmatpush1.msra.mxu0 %v287
        %624 = vmatprep.subr.mxu0 0.0
        %625 = vmatpush1.msra.mxu0 %v286
        %626 = vmatprep.subr.mxu0 0.0
        %627 = vmatpush1.msra.mxu0 %v285
        %628 = vmatprep.subr.mxu0 0.0
        %629 = vmatpush2.msra.mxu0 0.0
        %630 = vmatprep.subr.mxu0 0.0
        %631 = vmatpush2.msra.mxu0 0.0
        %632 = vmatprep.subr.mxu0 0.0
        %633 = vmatpush2.msra.mxu0 0.0
        %634 = vmatprep.subr.mxu0 0.0
        %635 = vmatpush2.msra.mxu0 0.0
        %636 = vmatprep.subr.mxu0 0.0
        %637 = vmatpush2.msra.mxu0 0.0
        %638 = vmatprep.subr.mxu0 0.0
        %639 = vmatpush2.msra.mxu0 0.0
        %640 = vmatprep.subr.mxu0 0.0
        %641 = vmatpush2.msra.mxu0 0.0
        %642 = vmatprep.subr.mxu0 0.0
        %643 = vmatpush2.msra.mxu0 0.0
        %644 = vmatprep.subr.mxu0 0.0
        %645 = vmatpush2.msra.mxu0 0.0
        %646 = vmatprep.subr.mxu0 0.0
        %647 = vmatpush2.msra.mxu0 0.0
        %648 = vmatprep.subr.mxu0 0.0
        %649 = vmatpush2.msra.mxu0 0.0
        %650 = vmatprep.subr.mxu0 0.0
        %651 = vmatpush2.msra.mxu0 0.0
        %652 = vmatprep.subr.mxu0 0.0
        %653 = vmatpush2.msra.mxu0 0.0
        %654 = vmatprep.subr.mxu0 0.0
        %655 = vmatpush2.msra.mxu0 0.0
        %656 = vmatprep.subr.mxu0 0.0
        %657 = vmatpush2.msra.mxu0 0.0
        %658 = vmatprep.subr.mxu0 0.0
        %659 = vmatpush2.msra.mxu0 0.0
        %660 = vmatprep.mubr.f32.mxu0 0.0
        %661 = vmatmul.mubr.f32.gmra.mxu0 %v594
        %v662 = vpop.f32.mrf.mxu0
        %v663 = vadd.f32 0.0, %v662
        %v664 = vpop.f32.mrf.mxu0
        %665 = vdwg.mxu0
        %v666 = vadd.f32 %v593, %v663
        %v667 = vxor.u32 %v666, 2147483648
        %v668 = vmul.f32 %v667, 1.442695
        %v669 = vpow.pop %v668
        %v670 = vadd.f32 %v669, 1.0
        %v671 = vrcp.pop %v670
        %v672 = vmul.f32 1.0, %v671
        %v673 = vtanh.pop %v666
        %v674 = vmul.f32 %v672, %v579
        %676 = vrot.lane.b32.xlu0 %v673, 64
        %v677 = vpop.permute.xlu0 %676
        %v679 = vmul.f32 %v672, %v677
        %681 = vrot.lane.b32.xlu0 %v679, 32
        %v682 = vpop.permute.xlu0 %681
        %v684 = vadd.f32 %v674, %v682
        %v685 = vtanh.pop %v684
        %687 = vrot.lane.b32.xlu0 %v685, 64
        %v688 = vpop.permute.xlu0 %687
        %v690 = vmul.f32 %v672, %v688
        %692 = vrot.lane.b32.xlu0 %v690, 32
        %v693 = vpop.permute.xlu0 %692
        %s695 = scalar_lea.vmem [#allocation2], 4
        %696 = vst.msk [vmem:[%s695] sm:$0x3] %vm485, %v693
        %s697 = scalar_lea.vmem [#allocation3], 6
        %v698 = vld [vmem:[%s697] sm:$0x3]
        %v699 = vsel %vm298, %v693, 0
        %701 = vmatprep.subr.mxu0 0.0
        %702 = vmatpush1.msra.mxu0 0.0
        %703 = vmatprep.subr.mxu0 0.0
        %704 = vmatpush1.msra.mxu0 0.0
        %705 = vmatprep.subr.mxu0 0.0
        %706 = vmatpush1.msra.mxu0 0.0
        %707 = vmatprep.subr.mxu0 0.0
        %708 = vmatpush1.msra.mxu0 0.0
        %709 = vmatprep.subr.mxu0 0.0
        %710 = vmatpush1.msra.mxu0 0.0
        %711 = vmatprep.subr.mxu0 0.0
        %712 = vmatpush1.msra.mxu0 0.0
        %713 = vmatprep.subr.mxu0 0.0
        %714 = vmatpush1.msra.mxu0 0.0
        %715 = vmatprep.subr.mxu0 0.0
        %716 = vmatpush1.msra.mxu0 0.0
        %717 = vmatprep.subr.mxu0 0.0
        %718 = vmatpush1.msra.mxu0 0.0
        %719 = vmatprep.subr.mxu0 0.0
        %720 = vmatpush1.msra.mxu0 0.0
        %721 = vmatprep.subr.mxu0 0.0
        %722 = vmatpush1.msra.mxu0 0.0
        %723 = vmatprep.subr.mxu0 0.0
        %724 = vmatpush1.msra.mxu0 0.0
        %725 = vmatprep.subr.mxu0 0.0
        %726 = vmatpush1.msra.mxu0 %v288
        %727 = vmatprep.subr.mxu0 0.0
        %728 = vmatpush1.msra.mxu0 %v287
        %729 = vmatprep.subr.mxu0 0.0
        %730 = vmatpush1.msra.mxu0 %v286
        %731 = vmatprep.subr.mxu0 0.0
        %732 = vmatpush1.msra.mxu0 %v285
        %733 = vmatprep.subr.mxu0 0.0
        %734 = vmatpush2.msra.mxu0 0.0
        %735 = vmatprep.subr.mxu0 0.0
        %736 = vmatpush2.msra.mxu0 0.0
        %737 = vmatprep.subr.mxu0 0.0
        %738 = vmatpush2.msra.mxu0 0.0
        %739 = vmatprep.subr.mxu0 0.0
        %740 = vmatpush2.msra.mxu0 0.0
        %741 = vmatprep.subr.mxu0 0.0
        %742 = vmatpush2.msra.mxu0 0.0
        %743 = vmatprep.subr.mxu0 0.0
        %744 = vmatpush2.msra.mxu0 0.0
        %745 = vmatprep.subr.mxu0 0.0
        %746 = vmatpush2.msra.mxu0 0.0
        %747 = vmatprep.subr.mxu0 0.0
        %748 = vmatpush2.msra.mxu0 0.0
        %749 = vmatprep.subr.mxu0 0.0
        %750 = vmatpush2.msra.mxu0 0.0
        %751 = vmatprep.subr.mxu0 0.0
        %752 = vmatpush2.msra.mxu0 0.0
        %753 = vmatprep.subr.mxu0 0.0
        %754 = vmatpush2.msra.mxu0 0.0
        %755 = vmatprep.subr.mxu0 0.0
        %756 = vmatpush2.msra.mxu0 0.0
        %757 = vmatprep.subr.mxu0 0.0
        %758 = vmatpush2.msra.mxu0 0.0
        %759 = vmatprep.subr.mxu0 0.0
        %760 = vmatpush2.msra.mxu0 0.0
        %761 = vmatprep.subr.mxu0 0.0
        %762 = vmatpush2.msra.mxu0 0.0
        %763 = vmatprep.subr.mxu0 0.0
        %764 = vmatpush2.msra.mxu0 0.0
        %765 = vmatprep.mubr.f32.mxu0 0.0
        %766 = vmatmul.mubr.f32.gmra.mxu0 %v699
        %v767 = vpop.f32.mrf.mxu0
        %v768 = vadd.f32 0.0, %v767
        %v769 = vpop.f32.mrf.mxu0
        %770 = vdwg.mxu0
        %v771 = vadd.f32 %v698, %v768
        %v772 = vxor.u32 %v771, 2147483648
        %v773 = vmul.f32 %v772, 1.442695
        %v774 = vpow.pop %v773
        %v775 = vadd.f32 %v774, 1.0
        %v776 = vrcp.pop %v775
        %v777 = vmul.f32 1.0, %v776
        %v778 = vtanh.pop %v771
        %v779 = vmul.f32 %v777, %v684
        %781 = vrot.lane.b32.xlu0 %v778, 64
        %v782 = vpop.permute.xlu0 %781
        %v784 = vmul.f32 %v777, %v782
        %786 = vrot.lane.b32.xlu0 %v784, 32
        %v787 = vpop.permute.xlu0 %786
        %v789 = vadd.f32 %v779, %v787
        %v790 = vtanh.pop %v789
        %792 = vrot.lane.b32.xlu0 %v790, 64
        %v793 = vpop.permute.xlu0 %792
        %v795 = vmul.f32 %v777, %v793
        %797 = vrot.lane.b32.xlu0 %v795, 32
        %v798 = vpop.permute.xlu0 %797
        %s800 = scalar_lea.vmem [#allocation2], 6
        %801 = vst.msk [vmem:[%s800] sm:$0x3] %vm485, %v798
        %s802 = scalar_lea.vmem [#allocation3], 8
        %v803 = vld [vmem:[%s802] sm:$0x3]
        %v804 = vsel %vm298, %v798, 0
        %806 = vmatprep.subr.mxu0 0.0
        %807 = vmatpush1.msra.mxu0 0.0
        %808 = vmatprep.subr.mxu0 0.0
        %809 = vmatpush1.msra.mxu0 0.0
        %810 = vmatprep.subr.mxu0 0.0
        %811 = vmatpush1.msra.mxu0 0.0
        %812 = vmatprep.subr.mxu0 0.0
        %813 = vmatpush1.msra.mxu0 0.0
        %814 = vmatprep.subr.mxu0 0.0
        %815 = vmatpush1.msra.mxu0 0.0
        %816 = vmatprep.subr.mxu0 0.0
        %817 = vmatpush1.msra.mxu0 0.0
        %818 = vmatprep.subr.mxu0 0.0
        %819 = vmatpush1.msra.mxu0 0.0
        %820 = vmatprep.subr.mxu0 0.0
        %821 = vmatpush1.msra.mxu0 0.0
        %822 = vmatprep.subr.mxu0 0.0
        %823 = vmatpush1.msra.mxu0 0.0
        %824 = vmatprep.subr.mxu0 0.0
        %825 = vmatpush1.msra.mxu0 0.0
        %826 = vmatprep.subr.mxu0 0.0
        %827 = vmatpush1.msra.mxu0 0.0
        %828 = vmatprep.subr.mxu0 0.0
        %829 = vmatpush1.msra.mxu0 0.0
        %830 = vmatprep.subr.mxu0 0.0
        %831 = vmatpush1.msra.mxu0 %v288
        %832 = vmatprep.subr.mxu0 0.0
        %833 = vmatpush1.msra.mxu0 %v287
        %834 = vmatprep.subr.mxu0 0.0
        %835 = vmatpush1.msra.mxu0 %v286
        %836 = vmatprep.subr.mxu0 0.0
        %837 = vmatpush1.msra.mxu0 %v285
        %838 = vmatprep.subr.mxu0 0.0
        %839 = vmatpush2.msra.mxu0 0.0
        %840 = vmatprep.subr.mxu0 0.0
        %841 = vmatpush2.msra.mxu0 0.0
        %842 = vmatprep.subr.mxu0 0.0
        %843 = vmatpush2.msra.mxu0 0.0
        %844 = vmatprep.subr.mxu0 0.0
        %845 = vmatpush2.msra.mxu0 0.0
        %846 = vmatprep.subr.mxu0 0.0
        %847 = vmatpush2.msra.mxu0 0.0
        %848 = vmatprep.subr.mxu0 0.0
        %849 = vmatpush2.msra.mxu0 0.0
        %850 = vmatprep.subr.mxu0 0.0
        %851 = vmatpush2.msra.mxu0 0.0
        %852 = vmatprep.subr.mxu0 0.0
        %853 = vmatpush2.msra.mxu0 0.0
        %854 = vmatprep.subr.mxu0 0.0
        %855 = vmatpush2.msra.mxu0 0.0
        %856 = vmatprep.subr.mxu0 0.0
        %857 = vmatpush2.msra.mxu0 0.0
        %858 = vmatprep.subr.mxu0 0.0
        %859 = vmatpush2.msra.mxu0 0.0
        %860 = vmatprep.subr.mxu0 0.0
        %861 = vmatpush2.msra.mxu0 0.0
        %862 = vmatprep.subr.mxu0 0.0
        %863 = vmatpush2.msra.mxu0 0.0
        %864 = vmatprep.subr.mxu0 0.0
        %865 = vmatpush2.msra.mxu0 0.0
        %866 = vmatprep.subr.mxu0 0.0
        %867 = vmatpush2.msra.mxu0 0.0
        %868 = vmatprep.subr.mxu0 0.0
        %869 = vmatpush2.msra.mxu0 0.0
        %870 = vmatprep.mubr.f32.mxu0 0.0
        %871 = vmatmul.mubr.f32.gmra.mxu0 %v804
        %v872 = vpop.f32.mrf.mxu0
        %v873 = vadd.f32 0.0, %v872
        %v874 = vpop.f32.mrf.mxu0
        %875 = vdwg.mxu0
        %v876 = vadd.f32 %v803, %v873
        %v877 = vxor.u32 %v876, 2147483648
        %v878 = vmul.f32 %v877, 1.442695
        %v879 = vpow.pop %v878
        %v880 = vadd.f32 %v879, 1.0
        %v881 = vrcp.pop %v880
        %v882 = vmul.f32 1.0, %v881
        %v883 = vtanh.pop %v876
        %v884 = vmul.f32 %v882, %v789
        %886 = vrot.lane.b32.xlu0 %v883, 64
        %v887 = vpop.permute.xlu0 %886
        %v889 = vmul.f32 %v882, %v887
        %891 = vrot.lane.b32.xlu0 %v889, 32
        %v892 = vpop.permute.xlu0 %891
        %v894 = vadd.f32 %v884, %v892
        %v895 = vtanh.pop %v894
        %897 = vrot.lane.b32.xlu0 %v895, 64
        %v898 = vpop.permute.xlu0 %897
        %v900 = vmul.f32 %v882, %v898
        %902 = vrot.lane.b32.xlu0 %v900, 32
        %v903 = vpop.permute.xlu0 %902
        %s905 = scalar_lea.vmem [#allocation2], 8
        %906 = vst.msk [vmem:[%s905] sm:$0x3] %vm485, %v903
        %s907 = scalar_lea.vmem [#allocation3], 10
        %v908 = vld [vmem:[%s907] sm:$0x3]
        %v909 = vsel %vm298, %v903, 0
        %911 = vmatprep.subr.mxu0 0.0
        %912 = vmatpush1.msra.mxu0 0.0
        %913 = vmatprep.subr.mxu0 0.0
        %914 = vmatpush1.msra.mxu0 0.0
        %915 = vmatprep.subr.mxu0 0.0
        %916 = vmatpush1.msra.mxu0 0.0
        %917 = vmatprep.subr.mxu0 0.0
        %918 = vmatpush1.msra.mxu0 0.0
        %919 = vmatprep.subr.mxu0 0.0
        %920 = vmatpush1.msra.mxu0 0.0
        %921 = vmatprep.subr.mxu0 0.0
        %922 = vmatpush1.msra.mxu0 0.0
        %923 = vmatprep.subr.mxu0 0.0
        %924 = vmatpush1.msra.mxu0 0.0
        %925 = vmatprep.subr.mxu0 0.0
        %926 = vmatpush1.msra.mxu0 0.0
        %927 = vmatprep.subr.mxu0 0.0
        %928 = vmatpush1.msra.mxu0 0.0
        %929 = vmatprep.subr.mxu0 0.0
        %930 = vmatpush1.msra.mxu0 0.0
        %931 = vmatprep.subr.mxu0 0.0
        %932 = vmatpush1.msra.mxu0 0.0
        %933 = vmatprep.subr.mxu0 0.0
        %934 = vmatpush1.msra.mxu0 0.0
        %935 = vmatprep.subr.mxu0 0.0
        %936 = vmatpush1.msra.mxu0 %v288
        %937 = vmatprep.subr.mxu0 0.0
        %938 = vmatpush1.msra.mxu0 %v287
        %939 = vmatprep.subr.mxu0 0.0
        %940 = vmatpush1.msra.mxu0 %v286
        %941 = vmatprep.subr.mxu0 0.0
        %942 = vmatpush1.msra.mxu0 %v285
        %943 = vmatprep.subr.mxu0 0.0
        %944 = vmatpush2.msra.mxu0 0.0
        %945 = vmatprep.subr.mxu0 0.0
        %946 = vmatpush2.msra.mxu0 0.0
        %947 = vmatprep.subr.mxu0 0.0
        %948 = vmatpush2.msra.mxu0 0.0
        %949 = vmatprep.subr.mxu0 0.0
        %950 = vmatpush2.msra.mxu0 0.0
        %951 = vmatprep.subr.mxu0 0.0
        %952 = vmatpush2.msra.mxu0 0.0
        %953 = vmatprep.subr.mxu0 0.0
        %954 = vmatpush2.msra.mxu0 0.0
        %955 = vmatprep.subr.mxu0 0.0
        %956 = vmatpush2.msra.mxu0 0.0
        %957 = vmatprep.subr.mxu0 0.0
        %958 = vmatpush2.msra.mxu0 0.0
        %959 = vmatprep.subr.mxu0 0.0
        %960 = vmatpush2.msra.mxu0 0.0
        %961 = vmatprep.subr.mxu0 0.0
        %962 = vmatpush2.msra.mxu0 0.0
        %963 = vmatprep.subr.mxu0 0.0
        %964 = vmatpush2.msra.mxu0 0.0
        %965 = vmatprep.subr.mxu0 0.0
        %966 = vmatpush2.msra.mxu0 0.0
        %967 = vmatprep.subr.mxu0 0.0
        %968 = vmatpush2.msra.mxu0 0.0
        %969 = vmatprep.subr.mxu0 0.0
        %970 = vmatpush2.msra.mxu0 0.0
        %971 = vmatprep.subr.mxu0 0.0
        %972 = vmatpush2.msra.mxu0 0.0
        %973 = vmatprep.subr.mxu0 0.0
        %974 = vmatpush2.msra.mxu0 0.0
        %975 = vmatprep.mubr.f32.mxu0 0.0
        %976 = vmatmul.mubr.f32.gmra.mxu0 %v909
        %v977 = vpop.f32.mrf.mxu0
        %v978 = vadd.f32 0.0, %v977
        %v979 = vpop.f32.mrf.mxu0
        %980 = vdwg.mxu0
        %v981 = vadd.f32 %v908, %v978
        %v982 = vxor.u32 %v981, 2147483648
        %v983 = vmul.f32 %v982, 1.442695
        %v984 = vpow.pop %v983
        %v985 = vadd.f32 %v984, 1.0
        %v986 = vrcp.pop %v985
        %v987 = vmul.f32 1.0, %v986
        %v988 = vtanh.pop %v981
        %v989 = vmul.f32 %v987, %v894
        %991 = vrot.lane.b32.xlu0 %v988, 64
        %v992 = vpop.permute.xlu0 %991
        %v994 = vmul.f32 %v987, %v992
        %996 = vrot.lane.b32.xlu0 %v994, 32
        %v997 = vpop.permute.xlu0 %996
        %v999 = vadd.f32 %v989, %v997
        %v1000 = vtanh.pop %v999
        %1002 = vrot.lane.b32.xlu0 %v1000, 64
        %v1003 = vpop.permute.xlu0 %1002
        %v1005 = vmul.f32 %v987, %v1003
        %1007 = vrot.lane.b32.xlu0 %v1005, 32
        %v1008 = vpop.permute.xlu0 %1007
        %s1010 = scalar_lea.vmem [#allocation2], 10
        %1011 = vst.msk [vmem:[%s1010] sm:$0x3] %vm485, %v1008
        %s1012 = scalar_lea.vmem [#allocation3], 12
        %v1013 = vld [vmem:[%s1012] sm:$0x3]
        %v1014 = vsel %vm298, %v1008, 0
        %1016 = vmatprep.subr.mxu0 0.0
        %1017 = vmatpush1.msra.mxu0 0.0
        %1018 = vmatprep.subr.mxu0 0.0
        %1019 = vmatpush1.msra.mxu0 0.0
        %1020 = vmatprep.subr.mxu0 0.0
        %1021 = vmatpush1.msra.mxu0 0.0
        %1022 = vmatprep.subr.mxu0 0.0
        %1023 = vmatpush1.msra.mxu0 0.0
        %1024 = vmatprep.subr.mxu0 0.0
        %1025 = vmatpush1.msra.mxu0 0.0
        %1026 = vmatprep.subr.mxu0 0.0
        %1027 = vmatpush1.msra.mxu0 0.0
        %1028 = vmatprep.subr.mxu0 0.0
        %1029 = vmatpush1.msra.mxu0 0.0
        %1030 = vmatprep.subr.mxu0 0.0
        %1031 = vmatpush1.msra.mxu0 0.0
        %1032 = vmatprep.subr.mxu0 0.0
        %1033 = vmatpush1.msra.mxu0 0.0
        %1034 = vmatprep.subr.mxu0 0.0
        %1035 = vmatpush1.msra.mxu0 0.0
        %1036 = vmatprep.subr.mxu0 0.0
        %1037 = vmatpush1.msra.mxu0 0.0
        %1038 = vmatprep.subr.mxu0 0.0
        %1039 = vmatpush1.msra.mxu0 0.0
        %1040 = vmatprep.subr.mxu0 0.0
        %1041 = vmatpush1.msra.mxu0 %v288
        %1042 = vmatprep.subr.mxu0 0.0
        %1043 = vmatpush1.msra.mxu0 %v287
        %1044 = vmatprep.subr.mxu0 0.0
        %1045 = vmatpush1.msra.mxu0 %v286
        %1046 = vmatprep.subr.mxu0 0.0
        %1047 = vmatpush1.msra.mxu0 %v285
        %1048 = vmatprep.subr.mxu0 0.0
        %1049 = vmatpush2.msra.mxu0 0.0
        %1050 = vmatprep.subr.mxu0 0.0
        %1051 = vmatpush2.msra.mxu0 0.0
        %1052 = vmatprep.subr.mxu0 0.0
        %1053 = vmatpush2.msra.mxu0 0.0
        %1054 = vmatprep.subr.mxu0 0.0
        %1055 = vmatpush2.msra.mxu0 0.0
        %1056 = vmatprep.subr.mxu0 0.0
        %1057 = vmatpush2.msra.mxu0 0.0
        %1058 = vmatprep.subr.mxu0 0.0
        %1059 = vmatpush2.msra.mxu0 0.0
        %1060 = vmatprep.subr.mxu0 0.0
        %1061 = vmatpush2.msra.mxu0 0.0
        %1062 = vmatprep.subr.mxu0 0.0
        %1063 = vmatpush2.msra.mxu0 0.0
        %1064 = vmatprep.subr.mxu0 0.0
        %1065 = vmatpush2.msra.mxu0 0.0
        %1066 = vmatprep.subr.mxu0 0.0
        %1067 = vmatpush2.msra.mxu0 0.0
        %1068 = vmatprep.subr.mxu0 0.0
        %1069 = vmatpush2.msra.mxu0 0.0
        %1070 = vmatprep.subr.mxu0 0.0
        %1071 = vmatpush2.msra.mxu0 0.0
        %1072 = vmatprep.subr.mxu0 0.0
        %1073 = vmatpush2.msra.mxu0 0.0
        %1074 = vmatprep.subr.mxu0 0.0
        %1075 = vmatpush2.msra.mxu0 0.0
        %1076 = vmatprep.subr.mxu0 0.0
        %1077 = vmatpush2.msra.mxu0 0.0
        %1078 = vmatprep.subr.mxu0 0.0
        %1079 = vmatpush2.msra.mxu0 0.0
        %1080 = vmatprep.mubr.f32.mxu0 0.0
        %1081 = vmatmul.mubr.f32.gmra.mxu0 %v1014
        %v1082 = vpop.f32.mrf.mxu0
        %v1083 = vadd.f32 0.0, %v1082
        %v1084 = vpop.f32.mrf.mxu0
        %1085 = vdwg.mxu0
        %v1086 = vadd.f32 %v1013, %v1083
        %v1087 = vxor.u32 %v1086, 2147483648
        %v1088 = vmul.f32 %v1087, 1.442695
        %v1089 = vpow.pop %v1088
        %v1090 = vadd.f32 %v1089, 1.0
        %v1091 = vrcp.pop %v1090
        %v1092 = vmul.f32 1.0, %v1091
        %v1093 = vtanh.pop %v1086
        %v1094 = vmul.f32 %v1092, %v999
        %1096 = vrot.lane.b32.xlu0 %v1093, 64
        %v1097 = vpop.permute.xlu0 %1096
        %v1099 = vmul.f32 %v1092, %v1097
        %1101 = vrot.lane.b32.xlu0 %v1099, 32
        %v1102 = vpop.permute.xlu0 %1101
        %v1104 = vadd.f32 %v1094, %v1102
        %v1105 = vtanh.pop %v1104
        %1107 = vrot.lane.b32.xlu0 %v1105, 64
        %v1108 = vpop.permute.xlu0 %1107
        %v1110 = vmul.f32 %v1092, %v1108
        %1112 = vrot.lane.b32.xlu0 %v1110, 32
        %v1113 = vpop.permute.xlu0 %1112
        %s1115 = scalar_lea.vmem [#allocation2], 12
        %1116 = vst.msk [vmem:[%s1115] sm:$0x3] %vm485, %v1113
        %s1117 = scalar_lea.vmem [#allocation3], 14
        %v1118 = vld [vmem:[%s1117] sm:$0x3]
        %v1119 = vsel %vm298, %v1113, 0
        %1121 = vmatprep.subr.mxu0 0.0
        %1122 = vmatpush1.msra.mxu0 0.0
        %1123 = vmatprep.subr.mxu0 0.0
        %1124 = vmatpush1.msra.mxu0 0.0
        %1125 = vmatprep.subr.mxu0 0.0
        %1126 = vmatpush1.msra.mxu0 0.0
        %1127 = vmatprep.subr.mxu0 0.0
        %1128 = vmatpush1.msra.mxu0 0.0
        %1129 = vmatprep.subr.mxu0 0.0
        %1130 = vmatpush1.msra.mxu0 0.0
        %1131 = vmatprep.subr.mxu0 0.0
        %1132 = vmatpush1.msra.mxu0 0.0
        %1133 = vmatprep.subr.mxu0 0.0
        %1134 = vmatpush1.msra.mxu0 0.0
        %1135 = vmatprep.subr.mxu0 0.0
        %1136 = vmatpush1.msra.mxu0 0.0
        %1137 = vmatprep.subr.mxu0 0.0
        %1138 = vmatpush1.msra.mxu0 0.0
        %1139 = vmatprep.subr.mxu0 0.0
        %1140 = vmatpush1.msra.mxu0 0.0
        %1141 = vmatprep.subr.mxu0 0.0
        %1142 = vmatpush1.msra.mxu0 0.0
        %1143 = vmatprep.subr.mxu0 0.0
        %1144 = vmatpush1.msra.mxu0 0.0
        %1145 = vmatprep.subr.mxu0 0.0
        %1146 = vmatpush1.msra.mxu0 %v288
        %1147 = vmatprep.subr.mxu0 0.0
        %1148 = vmatpush1.msra.mxu0 %v287
        %1149 = vmatprep.subr.mxu0 0.0
        %1150 = vmatpush1.msra.mxu0 %v286
        %1151 = vmatprep.subr.mxu0 0.0
        %1152 = vmatpush1.msra.mxu0 %v285
        %1153 = vmatprep.subr.mxu0 0.0
        %1154 = vmatpush2.msra.mxu0 0.0
        %1155 = vmatprep.subr.mxu0 0.0
        %1156 = vmatpush2.msra.mxu0 0.0
        %1157 = vmatprep.subr.mxu0 0.0
        %1158 = vmatpush2.msra.mxu0 0.0
        %1159 = vmatprep.subr.mxu0 0.0
        %1160 = vmatpush2.msra.mxu0 0.0
        %1161 = vmatprep.subr.mxu0 0.0
        %1162 = vmatpush2.msra.mxu0 0.0
        %1163 = vmatprep.subr.mxu0 0.0
        %1164 = vmatpush2.msra.mxu0 0.0
        %1165 = vmatprep.subr.mxu0 0.0
        %1166 = vmatpush2.msra.mxu0 0.0
        %1167 = vmatprep.subr.mxu0 0.0
        %1168 = vmatpush2.msra.mxu0 0.0
        %1169 = vmatprep.subr.mxu0 0.0
        %1170 = vmatpush2.msra.mxu0 0.0
        %1171 = vmatprep.subr.mxu0 0.0
        %1172 = vmatpush2.msra.mxu0 0.0
        %1173 = vmatprep.subr.mxu0 0.0
        %1174 = vmatpush2.msra.mxu0 0.0
        %1175 = vmatprep.subr.mxu0 0.0
        %1176 = vmatpush2.msra.mxu0 0.0
        %1177 = vmatprep.subr.mxu0 0.0
        %1178 = vmatpush2.msra.mxu0 0.0
        %1179 = vmatprep.subr.mxu0 0.0
        %1180 = vmatpush2.msra.mxu0 0.0
        %1181 = vmatprep.subr.mxu0 0.0
        %1182 = vmatpush2.msra.mxu0 0.0
        %1183 = vmatprep.subr.mxu0 0.0
        %1184 = vmatpush2.msra.mxu0 0.0
        %1185 = vmatprep.mubr.f32.mxu0 0.0
        %1186 = vmatmul.mubr.f32.gmra.mxu0 %v1119
        %v1187 = vpop.f32.mrf.mxu0
        %v1188 = vadd.f32 0.0, %v1187
        %v1189 = vpop.f32.mrf.mxu0
        %1190 = vdwg.mxu0
        %v1191 = vadd.f32 %v1118, %v1188
        %v1192 = vxor.u32 %v1191, 2147483648
        %v1193 = vmul.f32 %v1192, 1.442695
        %v1194 = vpow.pop %v1193
        %v1195 = vadd.f32 %v1194, 1.0
        %v1196 = vrcp.pop %v1195
        %v1197 = vmul.f32 1.0, %v1196
        %v1198 = vtanh.pop %v1191
        %v1199 = vmul.f32 %v1197, %v1104
        %1201 = vrot.lane.b32.xlu0 %v1198, 64
        %v1202 = vpop.permute.xlu0 %1201
        %v1204 = vmul.f32 %v1197, %v1202
        %1206 = vrot.lane.b32.xlu0 %v1204, 32
        %v1207 = vpop.permute.xlu0 %1206
        %v1209 = vadd.f32 %v1199, %v1207
        %v1210 = vtanh.pop %v1209
        %1212 = vrot.lane.b32.xlu0 %v1210, 64
        %v1213 = vpop.permute.xlu0 %1212
        %v1215 = vmul.f32 %v1197, %v1213
        %1217 = vrot.lane.b32.xlu0 %v1215, 32
        %v1218 = vpop.permute.xlu0 %1217
        %s1220 = scalar_lea.vmem [#allocation2], 14
        %1221 = vst.msk [vmem:[%s1220] sm:$0x3] %vm485, %v1218
        %p1222 = scmp.eq.s32.totalorder %s18, 1
        // Predicated region
        $region49: #{lstm_forward.1} parent=43 // pred_check
          %p1223 = pneg %p1222
        $region50: #{lstm_forward.1} parent=43 // pred_check_branch
          %1225 = sbr.rel (%p1223) target = $region52
        $region51: #{lstm_forward.1} parent=43 // pred_region
          %v1226 = vld [vmem:[%s4] sm:$0xff]
          %v1227 = vld [vmem:[%s4 + $0x8] sm:$0xff]
          %v1228 = vld [vmem:[%s4 + $0x10] sm:$0xff]
          %v1229 = vld [vmem:[%s4 + $0x18] sm:$0xff]
          %v1230 = vld [vmem:[%s5] sm:$0x1]
          %v1232 = vlaneseq
          %v1233 = vshrl.u32 %v1232, 7
          %v1234 = vsub.s32 0, %v1233
          %v1235 = vrot.slane %v1230, %v1234
          %v1237 = vsel %vm298, %v1218, 0
          %1239 = vmatprep.subr.mxu0 0.0
          %1240 = vmatpush1.msra.mxu0 0.0
          %1241 = vmatprep.subr.mxu0 0.0
          %1242 = vmatpush1.msra.mxu0 0.0
          %1243 = vmatprep.subr.mxu0 0.0
          %1244 = vmatpush1.msra.mxu0 0.0
          %1245 = vmatprep.subr.mxu0 0.0
          %1246 = vmatpush1.msra.mxu0 0.0
          %1247 = vmatprep.subr.mxu0 0.0
          %1248 = vmatpush1.msra.mxu0 0.0
          %1249 = vmatprep.subr.mxu0 0.0
          %1250 = vmatpush1.msra.mxu0 0.0
          %1251 = vmatprep.subr.mxu0 0.0
          %1252 = vmatpush1.msra.mxu0 0.0
          %1253 = vmatprep.subr.mxu0 0.0
          %1254 = vmatpush1.msra.mxu0 0.0
          %1255 = vmatprep.subr.mxu0 0.0
          %1256 = vmatpush1.msra.mxu0 0.0
          %1257 = vmatprep.subr.mxu0 0.0
          %1258 = vmatpush1.msra.mxu0 0.0
          %1259 = vmatprep.subr.mxu0 0.0
          %1260 = vmatpush1.msra.mxu0 0.0
          %1261 = vmatprep.subr.mxu0 0.0
          %1262 = vmatpush1.msra.mxu0 0.0
          %1263 = vmatprep.subr.mxu0 0.0
          %1264 = vmatpush1.msra.mxu0 %v1229
          %1265 = vmatprep.subr.mxu0 0.0
          %1266 = vmatpush1.msra.mxu0 %v1228
          %1267 = vmatprep.subr.mxu0 0.0
          %1268 = vmatpush1.msra.mxu0 %v1227
          %1269 = vmatprep.subr.mxu0 0.0
          %1270 = vmatpush1.msra.mxu0 %v1226
          %1271 = vmatprep.subr.mxu0 0.0
          %1272 = vmatpush2.msra.mxu0 0.0
          %1273 = vmatprep.subr.mxu0 0.0
          %1274 = vmatpush2.msra.mxu0 0.0
          %1275 = vmatprep.subr.mxu0 0.0
          %1276 = vmatpush2.msra.mxu0 0.0
          %1277 = vmatprep.subr.mxu0 0.0
          %1278 = vmatpush2.msra.mxu0 0.0
          %1279 = vmatprep.subr.mxu0 0.0
          %1280 = vmatpush2.msra.mxu0 0.0
          %1281 = vmatprep.subr.mxu0 0.0
          %1282 = vmatpush2.msra.mxu0 0.0
          %1283 = vmatprep.subr.mxu0 0.0
          %1284 = vmatpush2.msra.mxu0 0.0
          %1285 = vmatprep.subr.mxu0 0.0
          %1286 = vmatpush2.msra.mxu0 0.0
          %1287 = vmatprep.subr.mxu0 0.0
          %1288 = vmatpush2.msra.mxu0 0.0
          %1289 = vmatprep.subr.mxu0 0.0
          %1290 = vmatpush2.msra.mxu0 0.0
          %1291 = vmatprep.subr.mxu0 0.0
          %1292 = vmatpush2.msra.mxu0 0.0
          %1293 = vmatprep.subr.mxu0 0.0
          %1294 = vmatpush2.msra.mxu0 0.0
          %1295 = vmatprep.subr.mxu0 0.0
          %1296 = vmatpush2.msra.mxu0 0.0
          %1297 = vmatprep.subr.mxu0 0.0
          %1298 = vmatpush2.msra.mxu0 0.0
          %1299 = vmatprep.subr.mxu0 0.0
          %1300 = vmatpush2.msra.mxu0 0.0
          %1301 = vmatprep.subr.mxu0 0.0
          %1302 = vmatpush2.msra.mxu0 0.0
          %1303 = vmatprep.mubr.f32.mxu0 0.0
          %1304 = vmatmul.mubr.f32.gmra.mxu0 %v1237
          %v1305 = vpop.f32.mrf.mxu0
          %v1306 = vadd.f32 %v1235, %v1305
          %v1307 = vpop.f32.mrf.mxu0
          %1308 = vdwg.mxu0
          %vm1309 = vcmask 58368
          %1310 = vst.msk [vmem:[#allocation4] sm:$0x3] %vm1309, %v1306
        $region52: #{lstm_forward.1} parent=43 // pred_fallthru
          _
        // Predicated region
        $region53: #{lstm_forward.1} parent=43 // pred_check
          %p1311 = pneg %p172
        $region54: #{lstm_forward.1} parent=43 // pred_check_branch
          %1313 = sbr.rel (%p1311) target = $region56
        $region55: #{lstm_forward.1} parent=43 // pred_region
          %s1315 = ssub.s32 32, 32
          %1316 = vsyncadd [#allocation5], %s1315
          %s1318 = sshll.u32 [#allocation4], 4
          %s1319 = int_to_ptr.vmem [resolvable:$true] %s1318
          %1321 = dma.vmem_to_hbm [thread:$0]  %s1319, 32, %s6, [#allocation5]
        $region56: #{lstm_forward.1} parent=43 // pred_fallthru
          _
        // Predicated region
        $region57: #{lstm_forward.1} parent=43 // pred_check
          %p1322 = pneg %p172
        $region58: #{lstm_forward.1} parent=43 // pred_check_branch
          %1324 = sbr.rel (%p1322) target = $region60
        $region59: #{lstm_forward.1} parent=43 // pred_region
          %1325 = dma.done [#allocation5], 32
        $region60: #{lstm_forward.1} parent=43 // pred_fallthru
          _
      $region44: #{lstm_forward.1} parent=5 // pred_fallthru
        _
      %p1326 = scmp.le.s32.totalorder 2, %s13
      // Predicated region
      $region61: #{lstm_forward.1} parent=5 // pred_check
        %p1327 = pneg %p1326
      $region62: #{lstm_forward.1} parent=5 // pred_check_branch
        %1329 = sbr.rel (%p1327) target = $region64
      $region63: #{lstm_forward.1} parent=5 // pred_region
        %s1330 = ssub.s32 %s13, 2
      $region64: #{lstm_forward.1} parent=5 // pred_fallthru
        _
    $region6: #{lstm_forward.1} parent=1 // loop_footer
      %s17 = sadd.s32 1, %s13
    $region7: #{lstm_forward.1} parent=1 // loop_footer_branch
      %12 = sbr.rel target = $region3
    $region8: #{lstm_forward.1} parent=1 // loop_exit
      _
    %1331 = vsyncpa [#allocation5], 1
    %s1332 = scalar_lea.sflag [#allocation5], 1
    %1333 = vsyncpa %s1332, 1

</llo_original>
